<compile_context>
chip_gen: v7x
topology: tpu7x:2x2x1
jax: 0.10.0
libtpu: 0.0.40
codegen_flags: <defaults>
</compile_context>

<pallas_src>
import functools

import jax
import jax.numpy as jnp
from jax.experimental import pallas as pl
from jax.experimental.pallas import tpu as pltpu


# ----------------------------------------------------------------------------
# Fused kernel builder (shapes are compile-time constants via closure)
# ----------------------------------------------------------------------------
def _build_fused_kernel(B, H, M, C):
    H2 = H // 2
    # row offsets inside the packed attention-weight slab
    r_w1w = H                 # W1       (M, C)
    r_mmw1 = H + M            # mlp_m L1 (H, 32)
    r_mmw2 = 2 * H + M        # mlp_m L2 (32, C)
    r_w2w = 2 * H + M + 32    # W2       (C, C)

    def kernel(x_ref, mw_ref, mb_ref, aw_ref, ab_ref, A_ref, out_ref):
        x = x_ref[...]                                  # (3B, H) rows = [a; t; v]

        # ------------------ modality MLPs (batched over 3 modalities) --------
        # B is a multiple of 8, so this reshape is a pure sublane regrouping.
        xb = x.reshape(3, B, H)
        w1 = mw_ref[:, 0:H, 0:H2]                       # (3, H, H2)
        w2 = mw_ref[:, H:H + H2, 0:32]                  # (3, H2, 32)
        w3 = mw_ref[:, H + H2:H + H2 + 32, 0:C]         # (3, 32, C)
        b1 = mb_ref[:, 0:1, 0:H2]
        b2 = mb_ref[:, 1:2, 0:32]
        b3 = mb_ref[:, 2:3, 0:C]

        h = jnp.maximum(jnp.einsum("mbh,mhk->mbk", xb, w1,
                                   preferred_element_type=jnp.float32) + b1, 0.0)
        h = jnp.maximum(jnp.einsum("mbh,mhk->mbk", h, w2,
                                   preferred_element_type=jnp.float32) + b2, 0.0)
        lg = jnp.einsum("mbh,mhk->mbk", h, w3,
                        preferred_element_type=jnp.float32) + b3       # (3, B, C)

        # ------------------ class attention ----------------------------------
        nw = aw_ref[0:H, 0:M]                           # net weight   (H, M)
        w1w = aw_ref[r_w1w:r_w1w + M, 0:C]              # W1 weight    (M, C)
        mmw1 = aw_ref[r_mmw1:r_mmw1 + H, 0:32]          # mlp_m L1     (H, 32)
        mmw2 = aw_ref[r_mmw2:r_mmw2 + 32, 0:C]          # mlp_m L2     (32, C)
        w2w = aw_ref[r_w2w:r_w2w + C, 0:C]              # W2           (C, C)

        nb = ab_ref[0:1, 0:M]
        w1b = ab_ref[1:2, 0:C]
        mix = ab_ref[2:3, 0:C]
        mmb1 = ab_ref[3:4, 0:32]
        mmb2 = ab_ref[4:5, 0:C]
        w2b = ab_ref[5:6, 0:C]

        # shared over all 3 modalities: one (3B,H)@(H,M) + tanh + (3B,M)@(M,C)
        part = jnp.tanh(jnp.dot(x, nw, preferred_element_type=jnp.float32) + nb)
        scores = jnp.dot(part, w1w, preferred_element_type=jnp.float32) + w1b  # (3B,C)

        s_a = scores[0:B]
        s_t = scores[B:2 * B]
        s_v = scores[2 * B:3 * B]
        mmax = jnp.maximum(jnp.maximum(s_a, s_t), s_v)
        e_a = jnp.exp(s_a - mmax)
        e_t = jnp.exp(s_t - mmax)
        e_v = jnp.exp(s_v - mmax)
        inv = 1.0 / (e_a + e_t + e_v)   # exact divide (keeps 1e-5 tolerance)
        A_a = e_a * inv
        A_t = e_t * inv
        A_v = e_v * inv

        # single stacked attention output (one writeback DMA)
        A_ref[0:B, :] = A_a
        A_ref[B:2 * B, :] = A_t
        A_ref[2 * B:3 * B, :] = A_v

        # pooled = mix_pool_m @ (A @ x), factorized:
        #   pooled = sum_m (mix . A_m) * x_m
        xa = x[0:B]
        xt = x[B:2 * B]
        xv = x[2 * B:3 * B]
        wA = jnp.sum(A_a * mix, axis=1, keepdims=True)
        wT = jnp.sum(A_t * mix, axis=1, keepdims=True)
        wV = jnp.sum(A_v * mix, axis=1, keepdims=True)
        pooled = wA * xa + wT * xt + wV * xv                           # (B, H)

        hm = jnp.maximum(
            jnp.dot(pooled, mmw1, preferred_element_type=jnp.float32) + mmb1, 0.0)
        lm = jnp.dot(hm, mmw2, preferred_element_type=jnp.float32) + mmb2
        lm = jnp.dot(lm, w2w, preferred_element_type=jnp.float32) + w2b  # (B, C)

        # consolidated logits slab: [logits_a | logits_t | logits_v | logits_m]
        out_ref[:, 0:C] = lg[0]
        out_ref[:, C:2 * C] = lg[1]
        out_ref[:, 2 * C:3 * C] = lg[2]
        out_ref[:, 3 * C:4 * C] = lm

    return kernel


# ----------------------------------------------------------------------------
# Wrapper: pack params (once) + single pallas_call + output unpacking (glue)
# ----------------------------------------------------------------------------
def pack_params(params, H, M, C):
    """Pack the many tiny weights/biases into 4 flat f32 arrays."""
    H2 = H // 2
    Wc = max(H2, 32, C)
    mlp_w = jnp.zeros((3, H + H2 + 32, Wc), jnp.float32)
    mlp_b = jnp.zeros((3, 3, Wc), jnp.float32)
    for i, name in enumerate(("a", "t", "v")):
        w1, b1, w2, b2, w3, b3 = params[f"mlp_{name}"]
        mlp_w = mlp_w.at[i, 0:H, 0:H2].set(w1)
        mlp_w = mlp_w.at[i, H:H + H2, 0:32].set(w2)
        mlp_w = mlp_w.at[i, H + H2:H + H2 + 32, 0:C].set(w3)
        mlp_b = mlp_b.at[i, 0, 0:H2].set(b1[0])
        mlp_b = mlp_b.at[i, 1, 0:32].set(b2[0])
        mlp_b = mlp_b.at[i, 2, 0:C].set(b3[0])

    nw, nb, w1w, w1b, mix, mw1, mb1, mw2, mb2, w2w, w2b = params["attn"]
    Wa = max(M, 32, C)
    Ra = 2 * H + M + 32 + C
    attn_w = jnp.zeros((Ra, Wa), jnp.float32)
    attn_w = attn_w.at[0:H, 0:M].set(nw)
    attn_w = attn_w.at[H:H + M, 0:C].set(w1w)
    attn_w = attn_w.at[H + M:2 * H + M, 0:32].set(mw1)
    attn_w = attn_w.at[2 * H + M:2 * H + M + 32, 0:C].set(mw2)
    attn_w = attn_w.at[2 * H + M + 32:Ra, 0:C].set(w2w)

    attn_b = jnp.zeros((6, Wa), jnp.float32)
    attn_b = attn_b.at[0, 0:M].set(nb[0])
    attn_b = attn_b.at[1, 0:C].set(w1b[0])
    attn_b = attn_b.at[2, 0:C].set(mix[0])
    attn_b = attn_b.at[3, 0:32].set(mb1[0])
    attn_b = attn_b.at[4, 0:C].set(mb2[0])
    attn_b = attn_b.at[5, 0:C].set(w2b[0])
    return mlp_w, mlp_b, attn_w, attn_b


@functools.partial(jax.jit, static_argnames=("M", "C"))
def emo_class_attention_forward(x_a, x_t, x_v, mlp_w, mlp_b, attn_w, attn_b, *, M, C):
    B, H = x_a.shape
    x_stacked = jnp.concatenate([x_a, x_t, x_v], axis=0)        # (3B, H)
    vmem = pl.BlockSpec(memory_space=pltpu.MemorySpace.VMEM)
    kernel = _build_fused_kernel(B, H, M, C)
    # TODO(synk): at large B, add a B-tiled grid axis with
    # dimension_semantics=("parallel",) so the work shards across v7x's 2 TCs
    # and stays within v7x's smaller VMEM; at toy sizes a grid is pure overhead.
    A_flat, logits = pl.pallas_call(
        kernel,
        out_shape=(jax.ShapeDtypeStruct((3 * B, C), jnp.float32),
                   jax.ShapeDtypeStruct((B, 4 * C), jnp.float32)),
        in_specs=[vmem] * 5,
        out_specs=(vmem, vmem),
    )(x_stacked, mlp_w, mlp_b, attn_w, attn_b)
    A = jnp.transpose(A_flat.reshape(3, B, C), (1, 2, 0))        # (B, C, 3)
    return {
        "atten": A,
        "logits_a": logits[:, 0:C],
        "logits_t": logits[:, C:2 * C],
        "logits_v": logits[:, 2 * C:3 * C],
        "logits_m": logits[:, 3 * C:4 * C],
    }


# ----------------------------------------------------------------------------
# Parameter construction (deterministic, synthetic)
# ----------------------------------------------------------------------------
def make_params(key, H, M, C, widths):
    ks = iter(jax.random.split(key, 32))

    def lin(kin, kout, din, dout, scale=0.1):
        w = jax.random.uniform(kin, (din, dout), jnp.float32, -scale, scale)
        b = jax.random.uniform(kout, (1, dout), jnp.float32, -scale, scale)
        return w, b

    params = {}
    # modality MLPs: width -> width/2 -> 32 -> C
    for name, w in zip(("a", "t", "v"), widths):
        w1, b1 = lin(next(ks), next(ks), w, w // 2)
        w2, b2 = lin(next(ks), next(ks), w // 2, 32)
        w3, b3 = lin(next(ks), next(ks), 32, C)
        params[f"mlp_{name}"] = (w1, b1, w2, b2, w3, b3)

    # net (H -> M, tanh), W1 (M -> C)
    nw, nb = lin(next(ks), next(ks), H, M)
    w1w, w1b = lin(next(ks), next(ks), M, C)
    # mix_pool_m = C**-0.5 * rand(C)
    mix = (C ** -0.5) * jax.random.uniform(next(ks), (1, C), jnp.float32, 0.0, 1.0)
    # mlp_m: H -> 32 -> C, then W2: C -> C
    mw1, mb1 = lin(next(ks), next(ks), H, 32)
    mw2, mb2 = lin(next(ks), next(ks), 32, C)
    w2w, w2b = lin(next(ks), next(ks), C, C)
    params["attn"] = (nw, nb, w1w, w1b, mix, mw1, mb1, mw2, mb2, w2w, w2b)
    # NOTE: `ln` / `classifier` from the PyTorch module are unused in forward().
    return params


# ----------------------------------------------------------------------------
# Pure-JAX reference (mirrors the PyTorch forward) for verification
# ----------------------------------------------------------------------------
def reference_forward(x_a, x_t, x_v, params):
    def mlp(x, p):
        w1, b1, w2, b2, w3, b3 = p
        h = jnp.maximum(x @ w1 + b1, 0.0)
        h = jnp.maximum(h @ w2 + b2, 0.0)
        return h @ w3 + b3

    logits_a = mlp(x_a, params["mlp_a"])
    logits_t = mlp(x_t, params["mlp_t"])
    logits_v = mlp(x_v, params["mlp_v"])

    nw, nb, w1w, w1b, mix, mw1, mb1, mw2, mb2, w2w, w2b = params["attn"]
    x = jnp.stack([x_a, x_t, x_v], axis=1)                     # (B, 3, H)
    part = jnp.tanh(x @ nw + nb)                               # (B, 3, M)
    scores = jnp.swapaxes(part @ w1w + w1b, 2, 1)              # (B, C, 3)
    A = jax.nn.softmax(scores, axis=2)
    x_m = A @ x                                                # (B, C, H)
    x_m = jnp.einsum("c,bch->bh", mix[0], x_m)                 # (B, H)
    lm = jnp.maximum(x_m @ mw1 + mb1, 0.0) @ mw2 + mb2
    lm = lm @ w2w + w2b
    return {"atten": A, "logits_a": logits_a, "logits_t": logits_t,
            "logits_v": logits_v, "logits_m": lm}


if __name__ == "__main__":
    # small shapes consistent with the module: M=H=widths=32, C=7, batch=8
    B, H, M, C = 8, 32, 32, 7
    widths = [32, 32, 32]

    key = jax.random.PRNGKey(0)
    kp, ka, kt, kv = jax.random.split(key, 4)
    params = make_params(kp, H, M, C, widths)
    mlp_w, mlp_b, attn_w, attn_b = pack_params(params, H, M, C)

    x_a = jax.random.normal(ka, (B, widths[0]), jnp.float32)
    x_t = jax.random.normal(kt, (B, widths[1]), jnp.float32)
    x_v = jax.random.normal(kv, (B, widths[2]), jnp.float32)

    out = jax.block_until_ready(
        emo_class_attention_forward(x_a, x_t, x_v, mlp_w, mlp_b, attn_w, attn_b,
                                    M=M, C=C))
    ref = jax.block_until_ready(reference_forward(x_a, x_t, x_v, params))

    for k in ("atten", "logits_a", "logits_t", "logits_v", "logits_m"):
        assert out[k].shape == ref[k].shape, (k, out[k].shape, ref[k].shape)
        assert jnp.allclose(out[k], ref[k], atol=1e-5, rtol=1e-5), k

    print("KERNEL_OK")
</pallas_src>

<mosaic_0001>
module attributes {stable_mosaic.version = 11 : i64} {
  func.func @kernel(%arg0: memref<24x32xf32, #tpu.memory_space<vmem>>, %arg1: memref<3x80x32xf32, #tpu.memory_space<vmem>>, %arg2: memref<3x3x32xf32, #tpu.memory_space<vmem>>, %arg3: memref<135x32xf32, #tpu.memory_space<vmem>>, %arg4: memref<6x32xf32, #tpu.memory_space<vmem>>, %arg5: memref<24x7xf32, #tpu.memory_space<vmem>>, %arg6: memref<8x28xf32, #tpu.memory_space<vmem>>) attributes {dimension_semantics = [], scalar_prefetch = 0 : i64, scratch_operands = 0 : i64, tpu.core_type = #tpu.core_type<tc>} {
    %c0 = arith.constant 0 : index
    %c0_0 = arith.constant 0 : index
    %0 = vector.load %arg0[%c0, %c0_0] : memref<24x32xf32, #tpu.memory_space<vmem>>, vector<24x32xf32>
    %1 = vector.shape_cast %0 : vector<24x32xf32> to vector<3x8x32xf32>
    %c0_1 = arith.constant 0 : index
    %c0_2 = arith.constant 0 : index
    %c0_3 = arith.constant 0 : index
    %2 = vector.load %arg1[%c0_1, %c0_2, %c0_3] : memref<3x80x32xf32, #tpu.memory_space<vmem>>, vector<3x32x16xf32>
    %c0_4 = arith.constant 0 : index
    %c32 = arith.constant 32 : index
    %c0_5 = arith.constant 0 : index
    %3 = vector.load %arg1[%c0_4, %c32, %c0_5] : memref<3x80x32xf32, #tpu.memory_space<vmem>>, vector<3x16x32xf32>
    %c0_6 = arith.constant 0 : index
    %c48 = arith.constant 48 : index
    %c0_7 = arith.constant 0 : index
    %4 = vector.load %arg1[%c0_6, %c48, %c0_7] : memref<3x80x32xf32, #tpu.memory_space<vmem>>, vector<3x32x7xf32>
    %c0_8 = arith.constant 0 : index
    %c0_9 = arith.constant 0 : index
    %c0_10 = arith.constant 0 : index
    %5 = vector.load %arg2[%c0_8, %c0_9, %c0_10] : memref<3x3x32xf32, #tpu.memory_space<vmem>>, vector<3x1x16xf32>
    %c0_11 = arith.constant 0 : index
    %c1 = arith.constant 1 : index
    %c0_12 = arith.constant 0 : index
    %6 = vector.load %arg2[%c0_11, %c1, %c0_12] : memref<3x3x32xf32, #tpu.memory_space<vmem>>, vector<3x1x32xf32>
    %c0_13 = arith.constant 0 : index
    %c2 = arith.constant 2 : index
    %c0_14 = arith.constant 0 : index
    %7 = vector.load %arg2[%c0_13, %c2, %c0_14] : memref<3x3x32xf32, #tpu.memory_space<vmem>>, vector<3x1x7xf32>
    "tpu.trace_start"() <{level = 10 : i32, message = "mbh,mhk->mbk"}> : () -> ()
    %cst = arith.constant dense<0.000000e+00> : vector<3x8x16xf32>
    %8 = tpu.matmul %1, %2, %cst {dimension_numbers = #tpu.dot_dimension_numbers<[2], [1], [1], [2], [0, 0, 0, 1, 1, 2], [0], [0]>} : vector<3x8x32xf32>, vector<3x32x16xf32>, vector<3x8x16xf32> -> vector<3x8x16xf32>
    "tpu.trace_stop"() : () -> ()
    %9 = vector.broadcast %5 : vector<3x1x16xf32> to vector<3x8x16xf32>
    %10 = arith.addf %8, %9 : vector<3x8x16xf32>
    %cst_15 = arith.constant 0.000000e+00 : f32
    %11 = vector.broadcast %cst_15 : f32 to vector<3x8x16xf32>
    %12 = arith.maximumf %10, %11 : vector<3x8x16xf32>
    "tpu.trace_start"() <{level = 10 : i32, message = "mbh,mhk->mbk"}> : () -> ()
    %cst_16 = arith.constant dense<0.000000e+00> : vector<3x8x32xf32>
    %13 = tpu.matmul %12, %3, %cst_16 {dimension_numbers = #tpu.dot_dimension_numbers<[2], [1], [1], [2], [0, 0, 0, 1, 1, 2], [0], [0]>} : vector<3x8x16xf32>, vector<3x16x32xf32>, vector<3x8x32xf32> -> vector<3x8x32xf32>
    "tpu.trace_stop"() : () -> ()
    %14 = vector.broadcast %6 : vector<3x1x32xf32> to vector<3x8x32xf32>
    %15 = arith.addf %13, %14 : vector<3x8x32xf32>
    %cst_17 = arith.constant 0.000000e+00 : f32
    %16 = vector.broadcast %cst_17 : f32 to vector<3x8x32xf32>
    %17 = arith.maximumf %15, %16 : vector<3x8x32xf32>
    "tpu.trace_start"() <{level = 10 : i32, message = "mbh,mhk->mbk"}> : () -> ()
    %cst_18 = arith.constant dense<0.000000e+00> : vector<3x8x7xf32>
    %18 = tpu.matmul %17, %4, %cst_18 {dimension_numbers = #tpu.dot_dimension_numbers<[2], [1], [1], [2], [0, 0, 0, 1, 1, 2], [0], [0]>} : vector<3x8x32xf32>, vector<3x32x7xf32>, vector<3x8x7xf32> -> vector<3x8x7xf32>
    "tpu.trace_stop"() : () -> ()
    %19 = vector.broadcast %7 : vector<3x1x7xf32> to vector<3x8x7xf32>
    %20 = arith.addf %18, %19 : vector<3x8x7xf32>
    %c0_19 = arith.constant 0 : index
    %c0_20 = arith.constant 0 : index
    %21 = vector.load %arg3[%c0_19, %c0_20] : memref<135x32xf32, #tpu.memory_space<vmem>>, vector<32x32xf32>
    %c32_21 = arith.constant 32 : index
    %c0_22 = arith.constant 0 : index
    %22 = vector.load %arg3[%c32_21, %c0_22] : memref<135x32xf32, #tpu.memory_space<vmem>>, vector<32x7xf32>
    %c64 = arith.constant 64 : index
    %c0_23 = arith.constant 0 : index
    %23 = vector.load %arg3[%c64, %c0_23] : memref<135x32xf32, #tpu.memory_space<vmem>>, vector<32x32xf32>
    %c96 = arith.constant 96 : index
    %c0_24 = arith.constant 0 : index
    %24 = vector.load %arg3[%c96, %c0_24] : memref<135x32xf32, #tpu.memory_space<vmem>>, vector<32x7xf32>
    %c128 = arith.constant 128 : index
    %c0_25 = arith.constant 0 : index
    %25 = vector.load %arg3[%c128, %c0_25] : memref<135x32xf32, #tpu.memory_space<vmem>>, vector<7x7xf32>
    %c0_26 = arith.constant 0 : index
    %c0_27 = arith.constant 0 : index
    %26 = vector.load %arg4[%c0_26, %c0_27] : memref<6x32xf32, #tpu.memory_space<vmem>>, vector<1x32xf32>
    %c1_28 = arith.constant 1 : index
    %c0_29 = arith.constant 0 : index
    %27 = vector.load %arg4[%c1_28, %c0_29] : memref<6x32xf32, #tpu.memory_space<vmem>>, vector<1x7xf32>
    %c2_30 = arith.constant 2 : index
    %c0_31 = arith.constant 0 : index
    %28 = vector.load %arg4[%c2_30, %c0_31] : memref<6x32xf32, #tpu.memory_space<vmem>>, vector<1x7xf32>
    %c3 = arith.constant 3 : index
    %c0_32 = arith.constant 0 : index
    %29 = vector.load %arg4[%c3, %c0_32] : memref<6x32xf32, #tpu.memory_space<vmem>>, vector<1x32xf32>
    %c4 = arith.constant 4 : index
    %c0_33 = arith.constant 0 : index
    %30 = vector.load %arg4[%c4, %c0_33] : memref<6x32xf32, #tpu.memory_space<vmem>>, vector<1x7xf32>
    %c5 = arith.constant 5 : index
    %c0_34 = arith.constant 0 : index
    %31 = vector.load %arg4[%c5, %c0_34] : memref<6x32xf32, #tpu.memory_space<vmem>>, vector<1x7xf32>
    %cst_35 = arith.constant dense<0.000000e+00> : vector<24x32xf32>
    %32 = tpu.matmul %0, %21, %cst_35 {dimension_numbers = #tpu.dot_dimension_numbers<[1], [0], [0], [1], [0, 0, 1, 1], [], []>} : vector<24x32xf32>, vector<32x32xf32>, vector<24x32xf32> -> vector<24x32xf32>
    %33 = vector.broadcast %26 : vector<1x32xf32> to vector<24x32xf32>
    %34 = arith.addf %32, %33 : vector<24x32xf32>
    %35 = math.tanh %34 : vector<24x32xf32>
    %cst_36 = arith.constant dense<0.000000e+00> : vector<24x7xf32>
    %36 = tpu.matmul %35, %22, %cst_36 {dimension_numbers = #tpu.dot_dimension_numbers<[1], [0], [0], [1], [0, 0, 1, 1], [], []>} : vector<24x32xf32>, vector<32x7xf32>, vector<24x7xf32> -> vector<24x7xf32>
    %37 = vector.broadcast %27 : vector<1x7xf32> to vector<24x7xf32>
    %38 = arith.addf %36, %37 : vector<24x7xf32>
    %39 = vector.extract_strided_slice %38 {offsets = [0, 0], sizes = [8, 7], strides = [1, 1]} : vector<24x7xf32> to vector<8x7xf32>
    %40 = vector.extract_strided_slice %38 {offsets = [8, 0], sizes = [8, 7], strides = [1, 1]} : vector<24x7xf32> to vector<8x7xf32>
    %41 = vector.extract_strided_slice %38 {offsets = [16, 0], sizes = [8, 7], strides = [1, 1]} : vector<24x7xf32> to vector<8x7xf32>
    %42 = arith.maximumf %39, %40 : vector<8x7xf32>
    %43 = arith.maximumf %42, %41 : vector<8x7xf32>
    %44 = arith.subf %39, %43 : vector<8x7xf32>
    %45 = math.exp %44 : vector<8x7xf32>
    %46 = arith.subf %40, %43 : vector<8x7xf32>
    %47 = math.exp %46 : vector<8x7xf32>
    %48 = arith.subf %41, %43 : vector<8x7xf32>
    %49 = math.exp %48 : vector<8x7xf32>
    %50 = arith.addf %45, %47 : vector<8x7xf32>
    %51 = arith.addf %50, %49 : vector<8x7xf32>
    %cst_37 = arith.constant 1.000000e+00 : f32
    %52 = vector.broadcast %cst_37 : f32 to vector<8x7xf32>
    %53 = arith.divf %52, %51 : vector<8x7xf32>
    %54 = arith.mulf %45, %53 : vector<8x7xf32>
    %55 = arith.mulf %47, %53 : vector<8x7xf32>
    %56 = arith.mulf %49, %53 : vector<8x7xf32>
    %c0_38 = arith.constant 0 : index
    %c0_39 = arith.constant 0 : index
    %57 = vector.load %arg5[%c0_38, %c0_39] : memref<24x7xf32, #tpu.memory_space<vmem>>, vector<8x7xf32>
    tpu.vector_store %arg5[%c0_38, %c0_39], %54 {strides = array<i32>} : memref<24x7xf32, #tpu.memory_space<vmem>>, vector<8x7xf32>,
    %c8 = arith.constant 8 : index
    %c0_40 = arith.constant 0 : index
    %58 = vector.load %arg5[%c8, %c0_40] : memref<24x7xf32, #tpu.memory_space<vmem>>, vector<8x7xf32>
    tpu.vector_store %arg5[%c8, %c0_40], %55 {strides = array<i32>} : memref<24x7xf32, #tpu.memory_space<vmem>>, vector<8x7xf32>,
    %c16 = arith.constant 16 : index
    %c0_41 = arith.constant 0 : index
    %59 = vector.load %arg5[%c16, %c0_41] : memref<24x7xf32, #tpu.memory_space<vmem>>, vector<8x7xf32>
    tpu.vector_store %arg5[%c16, %c0_41], %56 {strides = array<i32>} : memref<24x7xf32, #tpu.memory_space<vmem>>, vector<8x7xf32>,
    %60 = vector.extract_strided_slice %0 {offsets = [0, 0], sizes = [8, 32], strides = [1, 1]} : vector<24x32xf32> to vector<8x32xf32>
    %61 = vector.extract_strided_slice %0 {offsets = [8, 0], sizes = [8, 32], strides = [1, 1]} : vector<24x32xf32> to vector<8x32xf32>
    %62 = vector.extract_strided_slice %0 {offsets = [16, 0], sizes = [8, 32], strides = [1, 1]} : vector<24x32xf32> to vector<8x32xf32>
    %63 = vector.broadcast %28 : vector<1x7xf32> to vector<8x7xf32>
    %64 = arith.mulf %54, %63 : vector<8x7xf32>
    %cst_42 = arith.constant dense<0.000000e+00> : vector<8xf32>
    %65 = vector.multi_reduction <add>, %64, %cst_42 [1] : vector<8x7xf32> to vector<8xf32>
    %66 = vector.shape_cast %65 : vector<8xf32> to vector<8x1xf32>
    %67 = vector.broadcast %28 : vector<1x7xf32> to vector<8x7xf32>
    %68 = arith.mulf %55, %67 : vector<8x7xf32>
    %cst_43 = arith.constant dense<0.000000e+00> : vector<8xf32>
    %69 = vector.multi_reduction <add>, %68, %cst_43 [1] : vector<8x7xf32> to vector<8xf32>
    %70 = vector.shape_cast %69 : vector<8xf32> to vector<8x1xf32>
    %71 = vector.broadcast %28 : vector<1x7xf32> to vector<8x7xf32>
    %72 = arith.mulf %56, %71 : vector<8x7xf32>
    %cst_44 = arith.constant dense<0.000000e+00> : vector<8xf32>
    %73 = vector.multi_reduction <add>, %72, %cst_44 [1] : vector<8x7xf32> to vector<8xf32>
    %74 = vector.shape_cast %73 : vector<8xf32> to vector<8x1xf32>
    %75 = vector.broadcast %66 : vector<8x1xf32> to vector<8x32xf32>
    %76 = arith.mulf %75, %60 : vector<8x32xf32>
    %77 = vector.broadcast %70 : vector<8x1xf32> to vector<8x32xf32>
    %78 = arith.mulf %77, %61 : vector<8x32xf32>
    %79 = arith.addf %76, %78 : vector<8x32xf32>
    %80 = vector.broadcast %74 : vector<8x1xf32> to vector<8x32xf32>
    %81 = arith.mulf %80, %62 : vector<8x32xf32>
    %82 = arith.addf %79, %81 : vector<8x32xf32>
    %cst_45 = arith.constant dense<0.000000e+00> : vector<8x32xf32>
    %83 = tpu.matmul %82, %23, %cst_45 {dimension_numbers = #tpu.dot_dimension_numbers<[1], [0], [0], [1], [0, 0, 1, 1], [], []>} : vector<8x32xf32>, vector<32x32xf32>, vector<8x32xf32> -> vector<8x32xf32>
    %84 = vector.broadcast %29 : vector<1x32xf32> to vector<8x32xf32>
    %85 = arith.addf %83, %84 : vector<8x32xf32>
    %cst_46 = arith.constant 0.000000e+00 : f32
    %86 = vector.broadcast %cst_46 : f32 to vector<8x32xf32>
    %87 = arith.maximumf %85, %86 : vector<8x32xf32>
    %cst_47 = arith.constant dense<0.000000e+00> : vector<8x7xf32>
    %88 = tpu.matmul %87, %24, %cst_47 {dimension_numbers = #tpu.dot_dimension_numbers<[1], [0], [0], [1], [0, 0, 1, 1], [], []>} : vector<8x32xf32>, vector<32x7xf32>, vector<8x7xf32> -> vector<8x7xf32>
    %89 = vector.broadcast %30 : vector<1x7xf32> to vector<8x7xf32>
    %90 = arith.addf %88, %89 : vector<8x7xf32>
    %cst_48 = arith.constant dense<0.000000e+00> : vector<8x7xf32>
    %91 = tpu.matmul %90, %25, %cst_48 {dimension_numbers = #tpu.dot_dimension_numbers<[1], [0], [0], [1], [0, 0, 1, 1], [], []>} : vector<8x7xf32>, vector<7x7xf32>, vector<8x7xf32> -> vector<8x7xf32>
    %92 = vector.broadcast %31 : vector<1x7xf32> to vector<8x7xf32>
    %93 = arith.addf %91, %92 : vector<8x7xf32>
    %94 = vector.extract_strided_slice %20 {offsets = [0, 0, 0], sizes = [1, 8, 7], strides = [1, 1, 1]} : vector<3x8x7xf32> to vector<1x8x7xf32>
    %95 = vector.shape_cast %94 : vector<1x8x7xf32> to vector<8x7xf32>
    %c0_49 = arith.constant 0 : index
    %c0_50 = arith.constant 0 : index
    %96 = vector.load %arg6[%c0_49, %c0_50] : memref<8x28xf32, #tpu.memory_space<vmem>>, vector<8x7xf32>
    tpu.vector_store %arg6[%c0_49, %c0_50], %95 {strides = array<i32>} : memref<8x28xf32, #tpu.memory_space<vmem>>, vector<8x7xf32>,
    %97 = vector.extract_strided_slice %20 {offsets = [1, 0, 0], sizes = [1, 8, 7], strides = [1, 1, 1]} : vector<3x8x7xf32> to vector<1x8x7xf32>
    %98 = vector.shape_cast %97 : vector<1x8x7xf32> to vector<8x7xf32>
    %c0_51 = arith.constant 0 : index
    %c7 = arith.constant 7 : index
    %99 = vector.load %arg6[%c0_51, %c7] : memref<8x28xf32, #tpu.memory_space<vmem>>, vector<8x7xf32>
    tpu.vector_store %arg6[%c0_51, %c7], %98 {strides = array<i32>} : memref<8x28xf32, #tpu.memory_space<vmem>>, vector<8x7xf32>,
    %100 = vector.extract_strided_slice %20 {offsets = [2, 0, 0], sizes = [1, 8, 7], strides = [1, 1, 1]} : vector<3x8x7xf32> to vector<1x8x7xf32>
    %101 = vector.shape_cast %100 : vector<1x8x7xf32> to vector<8x7xf32>
    %c0_52 = arith.constant 0 : index
    %c14 = arith.constant 14 : index
    %102 = vector.load %arg6[%c0_52, %c14] : memref<8x28xf32, #tpu.memory_space<vmem>>, vector<8x7xf32>
    tpu.vector_store %arg6[%c0_52, %c14], %101 {strides = array<i32>} : memref<8x28xf32, #tpu.memory_space<vmem>>, vector<8x7xf32>,
    %c0_53 = arith.constant 0 : index
    %c21 = arith.constant 21 : index
    %103 = vector.load %arg6[%c0_53, %c21] : memref<8x28xf32, #tpu.memory_space<vmem>>, vector<8x7xf32>
    tpu.vector_store %arg6[%c0_53, %c21], %93 {strides = array<i32>} : memref<8x28xf32, #tpu.memory_space<vmem>>, vector<8x7xf32>,
    return
  }
}

</mosaic_0001>

<llo_original>
// kernel: emo_class_attention_forward.1
$region0: #{emo_class_attention_forward.1}
  #allocation0 [shape = 'u32[]', space=smem, size = 0x4, offset = 0x4, fixed_abs, tag = 'smem constant byte address 0x4 - core index']
  #allocation1 [shape = 'u32[144,128]{1,0:T(1,128)}', space=vmem, size = 0x12000, scoped, tag = 'internal scratch']
  %s0 = inlined_call_operand.vmem [shape: f32[24,32], index: 0, kind: input, shape index: {}]
  %s1 = inlined_call_operand.vmem [shape: f32[3,80,32], index: 1, kind: input, shape index: {}]
  %s2 = inlined_call_operand.vmem [shape: f32[3,3,32], index: 2, kind: input, shape index: {}]
  %s3 = inlined_call_operand.vmem [shape: f32[135,32], index: 3, kind: input, shape index: {}]
  %s4 = inlined_call_operand.vmem [shape: f32[6,32], index: 4, kind: input, shape index: {}]
  %s5 = inlined_call_operand.hbm [shape: f32[24,7], index: 5, kind: output, shape index: {0}]
  %s6 = inlined_call_operand.vmem [shape: f32[8,28], index: 6, kind: output, shape index: {1}]
  %7 = xla_tuple %s5, %s6
  %s8 = sld [smem:[#allocation0]]
  $region38: #{emo_class_attention_forward.1} parent=0
    _
  %s10 = ssub.s32 1, %s8
  %s11 = scalar_select 0, %s10, %s8
  $region1: #{emo_class_attention_forward.1} parent=0
    #allocation2 [shape = 'u8[12288]{0}', space=vmem, size = 0x3000, scoped, tag = 'output window, operand 0, single buffered']
    #allocation3 [shape = 's32[1]{0}', space=sflag, size = 0x4, scoped, tag = 'scoped memory for emo_class_attention_forward.1']
    %12 = vsyncpa [#allocation3], 0
    // Predicated region
    $region2: #{emo_class_attention_forward.1} parent=1 // pred_check
      _
    $region3: #{emo_class_attention_forward.1} parent=1 // pred_check_branch
      %14 = sbr.rel (0) target = $region5
    $region4: #{emo_class_attention_forward.1} parent=1 // pred_region
      _
    $region5: #{emo_class_attention_forward.1} parent=1 // pred_fallthru
      _
    // Predicated region
    $region6: #{emo_class_attention_forward.1} parent=1 // pred_check
      _
    $region7: #{emo_class_attention_forward.1} parent=1 // pred_check_branch
      %16 = sbr.rel (0) target = $region9
    $region8: #{emo_class_attention_forward.1} parent=1 // pred_region
      _
    $region9: #{emo_class_attention_forward.1} parent=1 // pred_fallthru
      _
    // Predicated region
    $region10: #{emo_class_attention_forward.1} parent=1 // pred_check
      _
    $region11: #{emo_class_attention_forward.1} parent=1 // pred_check_branch
      %18 = sbr.rel (0) target = $region13
    $region12: #{emo_class_attention_forward.1} parent=1 // pred_region
      _
    $region13: #{emo_class_attention_forward.1} parent=1 // pred_fallthru
      _
    // Predicated region
    $region14: #{emo_class_attention_forward.1} parent=1 // pred_check
      _
    $region15: #{emo_class_attention_forward.1} parent=1 // pred_check_branch
      %20 = sbr.rel (0) target = $region17
    $region16: #{emo_class_attention_forward.1} parent=1 // pred_region
      _
    $region17: #{emo_class_attention_forward.1} parent=1 // pred_fallthru
      _
    // Predicated region
    $region18: #{emo_class_attention_forward.1} parent=1 // pred_check
      _
    $region19: #{emo_class_attention_forward.1} parent=1 // pred_check_branch
      %22 = sbr.rel (0) target = $region21
    $region20: #{emo_class_attention_forward.1} parent=1 // pred_region
      _
    $region21: #{emo_class_attention_forward.1} parent=1 // pred_fallthru
      _
    %v23 = vld [vmem:[%s0] sm:$0xff]
    %v24 = vld [vmem:[%s0 + $0x8] sm:$0xff]
    %v25 = vld [vmem:[%s0 + $0x10] sm:$0xff]
    %v26 = vld [vmem:[%s1] sm:$0xff]
    %v27 = vld [vmem:[%s1 + $0x8] sm:$0xff]
    %v28 = vld [vmem:[%s1 + $0x10] sm:$0xff]
    %v29 = vld [vmem:[%s1 + $0x18] sm:$0xff]
    %v30 = vld [vmem:[%s1 + $0x50] sm:$0xff]
    %v31 = vld [vmem:[%s1 + $0x58] sm:$0xff]
    %v32 = vld [vmem:[%s1 + $0x60] sm:$0xff]
    %v33 = vld [vmem:[%s1 + $0x68] sm:$0xff]
    %v34 = vld [vmem:[%s1 + $0xa0] sm:$0xff]
    %v35 = vld [vmem:[%s1 + $0xa8] sm:$0xff]
    %v36 = vld [vmem:[%s1 + $0xb0] sm:$0xff]
    %v37 = vld [vmem:[%s1 + $0xb8] sm:$0xff]
    %v38 = vld [vmem:[%s1 + $0x20] sm:$0xff]
    %v39 = vld [vmem:[%s1 + $0x28] sm:$0xff]
    %v40 = vld [vmem:[%s1 + $0x70] sm:$0xff]
    %v41 = vld [vmem:[%s1 + $0x78] sm:$0xff]
    %v42 = vld [vmem:[%s1 + $0xc0] sm:$0xff]
    %v43 = vld [vmem:[%s1 + $0xc8] sm:$0xff]
    %v44 = vld [vmem:[%s1 + $0x30] sm:$0xff]
    %v45 = vld [vmem:[%s1 + $0x38] sm:$0xff]
    %v46 = vld [vmem:[%s1 + $0x40] sm:$0xff]
    %v47 = vld [vmem:[%s1 + $0x48] sm:$0xff]
    %v48 = vld [vmem:[%s1 + $0x80] sm:$0xff]
    %v49 = vld [vmem:[%s1 + $0x88] sm:$0xff]
    %v50 = vld [vmem:[%s1 + $0x90] sm:$0xff]
    %v51 = vld [vmem:[%s1 + $0x98] sm:$0xff]
    %v52 = vld [vmem:[%s1 + $0xd0] sm:$0xff]
    %v53 = vld [vmem:[%s1 + $0xd8] sm:$0xff]
    %v54 = vld [vmem:[%s1 + $0xe0] sm:$0xff]
    %v55 = vld [vmem:[%s1 + $0xe8] sm:$0xff]
    %v56 = vld [vmem:[%s2] sm:$0x1]
    %v57 = vld [vmem:[%s2 + $0x4] sm:$0x1]
    %v58 = vld [vmem:[%s2 + $0x8] sm:$0x1]
    %v59 = vld [vmem:[%s2 + $0x1] sm:$0x1]
    %v60 = vld [vmem:[%s2 + $0x5] sm:$0x1]
    %v61 = vld [vmem:[%s2 + $0x9] sm:$0x1]
    %v62 = vld [vmem:[%s2 + $0x2] sm:$0x1]
    %v63 = vld [vmem:[%s2 + $0x6] sm:$0x1]
    %v64 = vld [vmem:[%s2 + $0xa] sm:$0x1]
    %v65 = vlaneseq
    %v66 = vshrl.u32 %v65, 7
    %v67 = vsub.s32 0, %v66
    %v68 = vrot.slane %v56, %v67
    %v69 = vlaneseq
    %v70 = vshrl.u32 %v69, 7
    %v71 = vsub.s32 0, %v70
    %v72 = vrot.slane %v57, %v71
    %v73 = vlaneseq
    %v74 = vshrl.u32 %v73, 7
    %v75 = vsub.s32 0, %v74
    %v76 = vrot.slane %v58, %v75
    %vm77 = vcmask 261120
    %v79 = vsel %vm77, %v23, 0
    %81 = vmatprep.subr.mxu0 0.0
    %82 = vmatpush1.msra.mxu0 %v26
    %83 = vmatprep.subr.mxu0 0.0
    %84 = vmatpush1.msra.mxu0 %v27
    %85 = vmatprep.subr.mxu0 0.0
    %86 = vmatpush1.msra.mxu0 %v28
    %87 = vmatprep.subr.mxu0 0.0
    %88 = vmatpush1.msra.mxu0 %v29
    %89 = vmatprep.subr.mxu0 0.0
    %90 = vmatpush1.msra.mxu0 0.0
    %91 = vmatprep.subr.mxu0 0.0
    %92 = vmatpush1.msra.mxu0 0.0
    %93 = vmatprep.subr.mxu0 0.0
    %94 = vmatpush1.msra.mxu0 0.0
    %95 = vmatprep.subr.mxu0 0.0
    %96 = vmatpush1.msra.mxu0 0.0
    %97 = vmatprep.subr.mxu0 0.0
    %98 = vmatpush1.msra.mxu0 0.0
    %99 = vmatprep.subr.mxu0 0.0
    %100 = vmatpush1.msra.mxu0 0.0
    %101 = vmatprep.subr.mxu0 0.0
    %102 = vmatpush1.msra.mxu0 0.0
    %103 = vmatprep.subr.mxu0 0.0
    %104 = vmatpush1.msra.mxu0 0.0
    %105 = vmatprep.subr.mxu0 0.0
    %106 = vmatpush1.msra.mxu0 0.0
    %107 = vmatprep.subr.mxu0 0.0
    %108 = vmatpush1.msra.mxu0 0.0
    %109 = vmatprep.subr.mxu0 0.0
    %110 = vmatpush1.msra.mxu0 0.0
    %111 = vmatprep.subr.mxu0 0.0
    %112 = vmatpush1.msra.mxu0 0.0
    %113 = vmatprep.subr.mxu0 0.0
    %114 = vmatpush1.msra.mxu0 0.0
    %115 = vmatprep.subr.mxu0 0.0
    %116 = vmatpush1.msra.mxu0 0.0
    %117 = vmatprep.subr.mxu0 0.0
    %118 = vmatpush1.msra.mxu0 0.0
    %119 = vmatprep.subr.mxu0 0.0
    %120 = vmatpush1.msra.mxu0 0.0
    %121 = vmatprep.subr.mxu0 0.0
    %122 = vmatpush1.msra.mxu0 0.0
    %123 = vmatprep.subr.mxu0 0.0
    %124 = vmatpush1.msra.mxu0 0.0
    %125 = vmatprep.subr.mxu0 0.0
    %126 = vmatpush1.msra.mxu0 0.0
    %127 = vmatprep.subr.mxu0 0.0
    %128 = vmatpush1.msra.mxu0 0.0
    %129 = vmatprep.subr.mxu0 0.0
    %130 = vmatpush1.msra.mxu0 0.0
    %131 = vmatprep.subr.mxu0 0.0
    %132 = vmatpush1.msra.mxu0 0.0
    %133 = vmatprep.subr.mxu0 0.0
    %134 = vmatpush1.msra.mxu0 0.0
    %135 = vmatprep.subr.mxu0 0.0
    %136 = vmatpush1.msra.mxu0 0.0
    %137 = vmatprep.subr.mxu0 0.0
    %138 = vmatpush1.msra.mxu0 0.0
    %139 = vmatprep.subr.mxu0 0.0
    %140 = vmatpush1.msra.mxu0 0.0
    %141 = vmatprep.subr.mxu0 0.0
    %142 = vmatpush1.msra.mxu0 0.0
    %143 = vmatprep.subr.mxu0 0.0
    %144 = vmatpush1.msra.mxu0 0.0
    %145 = vmatprep.mubr.f32.mxu0 0.0
    %146 = vmatmul.mubr.f32.gmra.mrb[0].mxu0 %v79
    %v147 = vpop.f32.mrb[0].mxu0
    %v148 = vadd.f32 %v68, %v147
    %v149 = vpop.f32.mrb[0].mxu0
    %150 = vdwg.mxu0
    %v152 = vsel %vm77, %v24, 0
    %154 = vmatprep.subr.mxu0 0.0
    %155 = vmatpush1.msra.mxu0 %v30
    %156 = vmatprep.subr.mxu0 0.0
    %157 = vmatpush1.msra.mxu0 %v31
    %158 = vmatprep.subr.mxu0 0.0
    %159 = vmatpush1.msra.mxu0 %v32
    %160 = vmatprep.subr.mxu0 0.0
    %161 = vmatpush1.msra.mxu0 %v33
    %162 = vmatprep.subr.mxu0 0.0
    %163 = vmatpush1.msra.mxu0 0.0
    %164 = vmatprep.subr.mxu0 0.0
    %165 = vmatpush1.msra.mxu0 0.0
    %166 = vmatprep.subr.mxu0 0.0
    %167 = vmatpush1.msra.mxu0 0.0
    %168 = vmatprep.subr.mxu0 0.0
    %169 = vmatpush1.msra.mxu0 0.0
    %170 = vmatprep.subr.mxu0 0.0
    %171 = vmatpush1.msra.mxu0 0.0
    %172 = vmatprep.subr.mxu0 0.0
    %173 = vmatpush1.msra.mxu0 0.0
    %174 = vmatprep.subr.mxu0 0.0
    %175 = vmatpush1.msra.mxu0 0.0
    %176 = vmatprep.subr.mxu0 0.0
    %177 = vmatpush1.msra.mxu0 0.0
    %178 = vmatprep.subr.mxu0 0.0
    %179 = vmatpush1.msra.mxu0 0.0
    %180 = vmatprep.subr.mxu0 0.0
    %181 = vmatpush1.msra.mxu0 0.0
    %182 = vmatprep.subr.mxu0 0.0
    %183 = vmatpush1.msra.mxu0 0.0
    %184 = vmatprep.subr.mxu0 0.0
    %185 = vmatpush1.msra.mxu0 0.0
    %186 = vmatprep.subr.mxu0 0.0
    %187 = vmatpush1.msra.mxu0 0.0
    %188 = vmatprep.subr.mxu0 0.0
    %189 = vmatpush1.msra.mxu0 0.0
    %190 = vmatprep.subr.mxu0 0.0
    %191 = vmatpush1.msra.mxu0 0.0
    %192 = vmatprep.subr.mxu0 0.0
    %193 = vmatpush1.msra.mxu0 0.0
    %194 = vmatprep.subr.mxu0 0.0
    %195 = vmatpush1.msra.mxu0 0.0
    %196 = vmatprep.subr.mxu0 0.0
    %197 = vmatpush1.msra.mxu0 0.0
    %198 = vmatprep.subr.mxu0 0.0
    %199 = vmatpush1.msra.mxu0 0.0
    %200 = vmatprep.subr.mxu0 0.0
    %201 = vmatpush1.msra.mxu0 0.0
    %202 = vmatprep.subr.mxu0 0.0
    %203 = vmatpush1.msra.mxu0 0.0
    %204 = vmatprep.subr.mxu0 0.0
    %205 = vmatpush1.msra.mxu0 0.0
    %206 = vmatprep.subr.mxu0 0.0
    %207 = vmatpush1.msra.mxu0 0.0
    %208 = vmatprep.subr.mxu0 0.0
    %209 = vmatpush1.msra.mxu0 0.0
    %210 = vmatprep.subr.mxu0 0.0
    %211 = vmatpush1.msra.mxu0 0.0
    %212 = vmatprep.subr.mxu0 0.0
    %213 = vmatpush1.msra.mxu0 0.0
    %214 = vmatprep.subr.mxu0 0.0
    %215 = vmatpush1.msra.mxu0 0.0
    %216 = vmatprep.subr.mxu0 0.0
    %217 = vmatpush1.msra.mxu0 0.0
    %218 = vmatprep.mubr.f32.mxu0 0.0
    %219 = vmatmul.mubr.f32.gmra.mrb[0].mxu0 %v152
    %v220 = vpop.f32.mrb[0].mxu0
    %v221 = vadd.f32 %v72, %v220
    %v222 = vpop.f32.mrb[0].mxu0
    %223 = vdwg.mxu0
    %v225 = vsel %vm77, %v25, 0
    %227 = vmatprep.subr.mxu0 0.0
    %228 = vmatpush1.msra.mxu0 %v34
    %229 = vmatprep.subr.mxu0 0.0
    %230 = vmatpush1.msra.mxu0 %v35
    %231 = vmatprep.subr.mxu0 0.0
    %232 = vmatpush1.msra.mxu0 %v36
    %233 = vmatprep.subr.mxu0 0.0
    %234 = vmatpush1.msra.mxu0 %v37
    %235 = vmatprep.subr.mxu0 0.0
    %236 = vmatpush1.msra.mxu0 0.0
    %237 = vmatprep.subr.mxu0 0.0
    %238 = vmatpush1.msra.mxu0 0.0
    %239 = vmatprep.subr.mxu0 0.0
    %240 = vmatpush1.msra.mxu0 0.0
    %241 = vmatprep.subr.mxu0 0.0
    %242 = vmatpush1.msra.mxu0 0.0
    %243 = vmatprep.subr.mxu0 0.0
    %244 = vmatpush1.msra.mxu0 0.0
    %245 = vmatprep.subr.mxu0 0.0
    %246 = vmatpush1.msra.mxu0 0.0
    %247 = vmatprep.subr.mxu0 0.0
    %248 = vmatpush1.msra.mxu0 0.0
    %249 = vmatprep.subr.mxu0 0.0
    %250 = vmatpush1.msra.mxu0 0.0
    %251 = vmatprep.subr.mxu0 0.0
    %252 = vmatpush1.msra.mxu0 0.0
    %253 = vmatprep.subr.mxu0 0.0
    %254 = vmatpush1.msra.mxu0 0.0
    %255 = vmatprep.subr.mxu0 0.0
    %256 = vmatpush1.msra.mxu0 0.0
    %257 = vmatprep.subr.mxu0 0.0
    %258 = vmatpush1.msra.mxu0 0.0
    %259 = vmatprep.subr.mxu0 0.0
    %260 = vmatpush1.msra.mxu0 0.0
    %261 = vmatprep.subr.mxu0 0.0
    %262 = vmatpush1.msra.mxu0 0.0
    %263 = vmatprep.subr.mxu0 0.0
    %264 = vmatpush1.msra.mxu0 0.0
    %265 = vmatprep.subr.mxu0 0.0
    %266 = vmatpush1.msra.mxu0 0.0
    %267 = vmatprep.subr.mxu0 0.0
    %268 = vmatpush1.msra.mxu0 0.0
    %269 = vmatprep.subr.mxu0 0.0
    %270 = vmatpush1.msra.mxu0 0.0
    %271 = vmatprep.subr.mxu0 0.0
    %272 = vmatpush1.msra.mxu0 0.0
    %273 = vmatprep.subr.mxu0 0.0
    %274 = vmatpush1.msra.mxu0 0.0
    %275 = vmatprep.subr.mxu0 0.0
    %276 = vmatpush1.msra.mxu0 0.0
    %277 = vmatprep.subr.mxu0 0.0
    %278 = vmatpush1.msra.mxu0 0.0
    %279 = vmatprep.subr.mxu0 0.0
    %280 = vmatpush1.msra.mxu0 0.0
    %281 = vmatprep.subr.mxu0 0.0
    %282 = vmatpush1.msra.mxu0 0.0
    %283 = vmatprep.subr.mxu0 0.0
    %284 = vmatpush1.msra.mxu0 0.0
    %285 = vmatprep.subr.mxu0 0.0
    %286 = vmatpush1.msra.mxu0 0.0
    %287 = vmatprep.subr.mxu0 0.0
    %288 = vmatpush1.msra.mxu0 0.0
    %289 = vmatprep.subr.mxu0 0.0
    %290 = vmatpush1.msra.mxu0 0.0
    %291 = vmatprep.mubr.f32.mxu0 0.0
    %292 = vmatmul.mubr.f32.gmra.mrb[0].mxu0 %v225
    %v293 = vpop.f32.mrb[0].mxu0
    %v294 = vadd.f32 %v76, %v293
    %v295 = vpop.f32.mrb[0].mxu0
    %296 = vdwg.mxu0
    %v297 = vmax.f32 %v148, 0.0
    %v298 = vmax.f32 %v221, 0.0
    %v299 = vmax.f32 %v294, 0.0
    %v300 = vlaneseq
    %v301 = vshrl.u32 %v300, 7
    %v302 = vsub.s32 0, %v301
    %v303 = vrot.slane %v59, %v302
    %v304 = vlaneseq
    %v305 = vshrl.u32 %v304, 7
    %v306 = vsub.s32 0, %v305
    %v307 = vrot.slane %v60, %v306
    %v308 = vlaneseq
    %v309 = vshrl.u32 %v308, 7
    %v310 = vsub.s32 0, %v309
    %v311 = vrot.slane %v61, %v310
    %vm312 = vcmask 130048
    %v314 = vsel %vm312, %v297, 0
    %316 = vmatprep.subr.mxu0 0.0
    %317 = vmatpush1.msra.mxu0 %v38
    %318 = vmatprep.subr.mxu0 0.0
    %319 = vmatpush1.msra.mxu0 %v39
    %320 = vmatprep.subr.mxu0 0.0
    %321 = vmatpush1.msra.mxu0 0.0
    %322 = vmatprep.subr.mxu0 0.0
    %323 = vmatpush1.msra.mxu0 0.0
    %324 = vmatprep.subr.mxu0 0.0
    %325 = vmatpush1.msra.mxu0 0.0
    %326 = vmatprep.subr.mxu0 0.0
    %327 = vmatpush1.msra.mxu0 0.0
    %328 = vmatprep.subr.mxu0 0.0
    %329 = vmatpush1.msra.mxu0 0.0
    %330 = vmatprep.subr.mxu0 0.0
    %331 = vmatpush1.msra.mxu0 0.0
    %332 = vmatprep.subr.mxu0 0.0
    %333 = vmatpush1.msra.mxu0 0.0
    %334 = vmatprep.subr.mxu0 0.0
    %335 = vmatpush1.msra.mxu0 0.0
    %336 = vmatprep.subr.mxu0 0.0
    %337 = vmatpush1.msra.mxu0 0.0
    %338 = vmatprep.subr.mxu0 0.0
    %339 = vmatpush1.msra.mxu0 0.0
    %340 = vmatprep.subr.mxu0 0.0
    %341 = vmatpush1.msra.mxu0 0.0
    %342 = vmatprep.subr.mxu0 0.0
    %343 = vmatpush1.msra.mxu0 0.0
    %344 = vmatprep.subr.mxu0 0.0
    %345 = vmatpush1.msra.mxu0 0.0
    %346 = vmatprep.subr.mxu0 0.0
    %347 = vmatpush1.msra.mxu0 0.0
    %348 = vmatprep.subr.mxu0 0.0
    %349 = vmatpush1.msra.mxu0 0.0
    %350 = vmatprep.subr.mxu0 0.0
    %351 = vmatpush1.msra.mxu0 0.0
    %352 = vmatprep.subr.mxu0 0.0
    %353 = vmatpush1.msra.mxu0 0.0
    %354 = vmatprep.subr.mxu0 0.0
    %355 = vmatpush1.msra.mxu0 0.0
    %356 = vmatprep.subr.mxu0 0.0
    %357 = vmatpush1.msra.mxu0 0.0
    %358 = vmatprep.subr.mxu0 0.0
    %359 = vmatpush1.msra.mxu0 0.0
    %360 = vmatprep.subr.mxu0 0.0
    %361 = vmatpush1.msra.mxu0 0.0
    %362 = vmatprep.subr.mxu0 0.0
    %363 = vmatpush1.msra.mxu0 0.0
    %364 = vmatprep.subr.mxu0 0.0
    %365 = vmatpush1.msra.mxu0 0.0
    %366 = vmatprep.subr.mxu0 0.0
    %367 = vmatpush1.msra.mxu0 0.0
    %368 = vmatprep.subr.mxu0 0.0
    %369 = vmatpush1.msra.mxu0 0.0
    %370 = vmatprep.subr.mxu0 0.0
    %371 = vmatpush1.msra.mxu0 0.0
    %372 = vmatprep.subr.mxu0 0.0
    %373 = vmatpush1.msra.mxu0 0.0
    %374 = vmatprep.subr.mxu0 0.0
    %375 = vmatpush1.msra.mxu0 0.0
    %376 = vmatprep.subr.mxu0 0.0
    %377 = vmatpush1.msra.mxu0 0.0
    %378 = vmatprep.subr.mxu0 0.0
    %379 = vmatpush1.msra.mxu0 0.0
    %380 = vmatprep.mubr.f32.mxu0 0.0
    %381 = vmatmul.mubr.f32.gmra.mrb[0].mxu0 %v314
    %v382 = vpop.f32.mrb[0].mxu0
    %v383 = vadd.f32 %v303, %v382
    %v384 = vpop.f32.mrb[0].mxu0
    %385 = vdwg.mxu0
    %v387 = vsel %vm312, %v298, 0
    %389 = vmatprep.subr.mxu0 0.0
    %390 = vmatpush1.msra.mxu0 %v40
    %391 = vmatprep.subr.mxu0 0.0
    %392 = vmatpush1.msra.mxu0 %v41
    %393 = vmatprep.subr.mxu0 0.0
    %394 = vmatpush1.msra.mxu0 0.0
    %395 = vmatprep.subr.mxu0 0.0
    %396 = vmatpush1.msra.mxu0 0.0
    %397 = vmatprep.subr.mxu0 0.0
    %398 = vmatpush1.msra.mxu0 0.0
    %399 = vmatprep.subr.mxu0 0.0
    %400 = vmatpush1.msra.mxu0 0.0
    %401 = vmatprep.subr.mxu0 0.0
    %402 = vmatpush1.msra.mxu0 0.0
    %403 = vmatprep.subr.mxu0 0.0
    %404 = vmatpush1.msra.mxu0 0.0
    %405 = vmatprep.subr.mxu0 0.0
    %406 = vmatpush1.msra.mxu0 0.0
    %407 = vmatprep.subr.mxu0 0.0
    %408 = vmatpush1.msra.mxu0 0.0
    %409 = vmatprep.subr.mxu0 0.0
    %410 = vmatpush1.msra.mxu0 0.0
    %411 = vmatprep.subr.mxu0 0.0
    %412 = vmatpush1.msra.mxu0 0.0
    %413 = vmatprep.subr.mxu0 0.0
    %414 = vmatpush1.msra.mxu0 0.0
    %415 = vmatprep.subr.mxu0 0.0
    %416 = vmatpush1.msra.mxu0 0.0
    %417 = vmatprep.subr.mxu0 0.0
    %418 = vmatpush1.msra.mxu0 0.0
    %419 = vmatprep.subr.mxu0 0.0
    %420 = vmatpush1.msra.mxu0 0.0
    %421 = vmatprep.subr.mxu0 0.0
    %422 = vmatpush1.msra.mxu0 0.0
    %423 = vmatprep.subr.mxu0 0.0
    %424 = vmatpush1.msra.mxu0 0.0
    %425 = vmatprep.subr.mxu0 0.0
    %426 = vmatpush1.msra.mxu0 0.0
    %427 = vmatprep.subr.mxu0 0.0
    %428 = vmatpush1.msra.mxu0 0.0
    %429 = vmatprep.subr.mxu0 0.0
    %430 = vmatpush1.msra.mxu0 0.0
    %431 = vmatprep.subr.mxu0 0.0
    %432 = vmatpush1.msra.mxu0 0.0
    %433 = vmatprep.subr.mxu0 0.0
    %434 = vmatpush1.msra.mxu0 0.0
    %435 = vmatprep.subr.mxu0 0.0
    %436 = vmatpush1.msra.mxu0 0.0
    %437 = vmatprep.subr.mxu0 0.0
    %438 = vmatpush1.msra.mxu0 0.0
    %439 = vmatprep.subr.mxu0 0.0
    %440 = vmatpush1.msra.mxu0 0.0
    %441 = vmatprep.subr.mxu0 0.0
    %442 = vmatpush1.msra.mxu0 0.0
    %443 = vmatprep.subr.mxu0 0.0
    %444 = vmatpush1.msra.mxu0 0.0
    %445 = vmatprep.subr.mxu0 0.0
    %446 = vmatpush1.msra.mxu0 0.0
    %447 = vmatprep.subr.mxu0 0.0
    %448 = vmatpush1.msra.mxu0 0.0
    %449 = vmatprep.subr.mxu0 0.0
    %450 = vmatpush1.msra.mxu0 0.0
    %451 = vmatprep.subr.mxu0 0.0
    %452 = vmatpush1.msra.mxu0 0.0
    %453 = vmatprep.mubr.f32.mxu0 0.0
    %454 = vmatmul.mubr.f32.gmra.mrb[0].mxu0 %v387
    %v455 = vpop.f32.mrb[0].mxu0
    %v456 = vadd.f32 %v307, %v455
    %v457 = vpop.f32.mrb[0].mxu0
    %458 = vdwg.mxu0
    %v460 = vsel %vm312, %v299, 0
    %462 = vmatprep.subr.mxu0 0.0
    %463 = vmatpush1.msra.mxu0 %v42
    %464 = vmatprep.subr.mxu0 0.0
    %465 = vmatpush1.msra.mxu0 %v43
    %466 = vmatprep.subr.mxu0 0.0
    %467 = vmatpush1.msra.mxu0 0.0
    %468 = vmatprep.subr.mxu0 0.0
    %469 = vmatpush1.msra.mxu0 0.0
    %470 = vmatprep.subr.mxu0 0.0
    %471 = vmatpush1.msra.mxu0 0.0
    %472 = vmatprep.subr.mxu0 0.0
    %473 = vmatpush1.msra.mxu0 0.0
    %474 = vmatprep.subr.mxu0 0.0
    %475 = vmatpush1.msra.mxu0 0.0
    %476 = vmatprep.subr.mxu0 0.0
    %477 = vmatpush1.msra.mxu0 0.0
    %478 = vmatprep.subr.mxu0 0.0
    %479 = vmatpush1.msra.mxu0 0.0
    %480 = vmatprep.subr.mxu0 0.0
    %481 = vmatpush1.msra.mxu0 0.0
    %482 = vmatprep.subr.mxu0 0.0
    %483 = vmatpush1.msra.mxu0 0.0
    %484 = vmatprep.subr.mxu0 0.0
    %485 = vmatpush1.msra.mxu0 0.0
    %486 = vmatprep.subr.mxu0 0.0
    %487 = vmatpush1.msra.mxu0 0.0
    %488 = vmatprep.subr.mxu0 0.0
    %489 = vmatpush1.msra.mxu0 0.0
    %490 = vmatprep.subr.mxu0 0.0
    %491 = vmatpush1.msra.mxu0 0.0
    %492 = vmatprep.subr.mxu0 0.0
    %493 = vmatpush1.msra.mxu0 0.0
    %494 = vmatprep.subr.mxu0 0.0
    %495 = vmatpush1.msra.mxu0 0.0
    %496 = vmatprep.subr.mxu0 0.0
    %497 = vmatpush1.msra.mxu0 0.0
    %498 = vmatprep.subr.mxu0 0.0
    %499 = vmatpush1.msra.mxu0 0.0
    %500 = vmatprep.subr.mxu0 0.0
    %501 = vmatpush1.msra.mxu0 0.0
    %502 = vmatprep.subr.mxu0 0.0
    %503 = vmatpush1.msra.mxu0 0.0
    %504 = vmatprep.subr.mxu0 0.0
    %505 = vmatpush1.msra.mxu0 0.0
    %506 = vmatprep.subr.mxu0 0.0
    %507 = vmatpush1.msra.mxu0 0.0
    %508 = vmatprep.subr.mxu0 0.0
    %509 = vmatpush1.msra.mxu0 0.0
    %510 = vmatprep.subr.mxu0 0.0
    %511 = vmatpush1.msra.mxu0 0.0
    %512 = vmatprep.subr.mxu0 0.0
    %513 = vmatpush1.msra.mxu0 0.0
    %514 = vmatprep.subr.mxu0 0.0
    %515 = vmatpush1.msra.mxu0 0.0
    %516 = vmatprep.subr.mxu0 0.0
    %517 = vmatpush1.msra.mxu0 0.0
    %518 = vmatprep.subr.mxu0 0.0
    %519 = vmatpush1.msra.mxu0 0.0
    %520 = vmatprep.subr.mxu0 0.0
    %521 = vmatpush1.msra.mxu0 0.0
    %522 = vmatprep.subr.mxu0 0.0
    %523 = vmatpush1.msra.mxu0 0.0
    %524 = vmatprep.subr.mxu0 0.0
    %525 = vmatpush1.msra.mxu0 0.0
    %526 = vmatprep.mubr.f32.mxu0 0.0
    %527 = vmatmul.mubr.f32.gmra.mrb[0].mxu0 %v460
    %v528 = vpop.f32.mrb[0].mxu0
    %v529 = vadd.f32 %v311, %v528
    %v530 = vpop.f32.mrb[0].mxu0
    %531 = vdwg.mxu0
    %v532 = vmax.f32 %v383, 0.0
    %v533 = vmax.f32 %v456, 0.0
    %v534 = vmax.f32 %v529, 0.0
    %v535 = vlaneseq
    %v536 = vshrl.u32 %v535, 7
    %v537 = vsub.s32 0, %v536
    %v538 = vrot.slane %v62, %v537
    %v539 = vlaneseq
    %v540 = vshrl.u32 %v539, 7
    %v541 = vsub.s32 0, %v540
    %v542 = vrot.slane %v63, %v541
    %v543 = vlaneseq
    %v544 = vshrl.u32 %v543, 7
    %v545 = vsub.s32 0, %v544
    %v546 = vrot.slane %v64, %v545
    %v548 = vsel %vm77, %v532, 0
    %550 = vmatprep.subr.mxu0 0.0
    %551 = vmatpush1.msra.mxu0 %v44
    %552 = vmatprep.subr.mxu0 0.0
    %553 = vmatpush1.msra.mxu0 %v45
    %554 = vmatprep.subr.mxu0 0.0
    %555 = vmatpush1.msra.mxu0 %v46
    %556 = vmatprep.subr.mxu0 0.0
    %557 = vmatpush1.msra.mxu0 %v47
    %558 = vmatprep.subr.mxu0 0.0
    %559 = vmatpush1.msra.mxu0 0.0
    %560 = vmatprep.subr.mxu0 0.0
    %561 = vmatpush1.msra.mxu0 0.0
    %562 = vmatprep.subr.mxu0 0.0
    %563 = vmatpush1.msra.mxu0 0.0
    %564 = vmatprep.subr.mxu0 0.0
    %565 = vmatpush1.msra.mxu0 0.0
    %566 = vmatprep.subr.mxu0 0.0
    %567 = vmatpush1.msra.mxu0 0.0
    %568 = vmatprep.subr.mxu0 0.0
    %569 = vmatpush1.msra.mxu0 0.0
    %570 = vmatprep.subr.mxu0 0.0
    %571 = vmatpush1.msra.mxu0 0.0
    %572 = vmatprep.subr.mxu0 0.0
    %573 = vmatpush1.msra.mxu0 0.0
    %574 = vmatprep.subr.mxu0 0.0
    %575 = vmatpush1.msra.mxu0 0.0
    %576 = vmatprep.subr.mxu0 0.0
    %577 = vmatpush1.msra.mxu0 0.0
    %578 = vmatprep.subr.mxu0 0.0
    %579 = vmatpush1.msra.mxu0 0.0
    %580 = vmatprep.subr.mxu0 0.0
    %581 = vmatpush1.msra.mxu0 0.0
    %582 = vmatprep.subr.mxu0 0.0
    %583 = vmatpush1.msra.mxu0 0.0
    %584 = vmatprep.subr.mxu0 0.0
    %585 = vmatpush1.msra.mxu0 0.0
    %586 = vmatprep.subr.mxu0 0.0
    %587 = vmatpush1.msra.mxu0 0.0
    %588 = vmatprep.subr.mxu0 0.0
    %589 = vmatpush1.msra.mxu0 0.0
    %590 = vmatprep.subr.mxu0 0.0
    %591 = vmatpush1.msra.mxu0 0.0
    %592 = vmatprep.subr.mxu0 0.0
    %593 = vmatpush1.msra.mxu0 0.0
    %594 = vmatprep.subr.mxu0 0.0
    %595 = vmatpush1.msra.mxu0 0.0
    %596 = vmatprep.subr.mxu0 0.0
    %597 = vmatpush1.msra.mxu0 0.0
    %598 = vmatprep.subr.mxu0 0.0
    %599 = vmatpush1.msra.mxu0 0.0
    %600 = vmatprep.subr.mxu0 0.0
    %601 = vmatpush1.msra.mxu0 0.0
    %602 = vmatprep.subr.mxu0 0.0
    %603 = vmatpush1.msra.mxu0 0.0
    %604 = vmatprep.subr.mxu0 0.0
    %605 = vmatpush1.msra.mxu0 0.0
    %606 = vmatprep.subr.mxu0 0.0
    %607 = vmatpush1.msra.mxu0 0.0
    %608 = vmatprep.subr.mxu0 0.0
    %609 = vmatpush1.msra.mxu0 0.0
    %610 = vmatprep.subr.mxu0 0.0
    %611 = vmatpush1.msra.mxu0 0.0
    %612 = vmatprep.subr.mxu0 0.0
    %613 = vmatpush1.msra.mxu0 0.0
    %614 = vmatprep.mubr.f32.mxu0 0.0
    %615 = vmatmul.mubr.f32.gmra.mrb[0].mxu0 %v548
    %v616 = vpop.f32.mrb[0].mxu0
    %v617 = vadd.f32 %v538, %v616
    %v618 = vpop.f32.mrb[0].mxu0
    %619 = vdwg.mxu0
    %v621 = vsel %vm77, %v533, 0
    %623 = vmatprep.subr.mxu0 0.0
    %624 = vmatpush1.msra.mxu0 %v48
    %625 = vmatprep.subr.mxu0 0.0
    %626 = vmatpush1.msra.mxu0 %v49
    %627 = vmatprep.subr.mxu0 0.0
    %628 = vmatpush1.msra.mxu0 %v50
    %629 = vmatprep.subr.mxu0 0.0
    %630 = vmatpush1.msra.mxu0 %v51
    %631 = vmatprep.subr.mxu0 0.0
    %632 = vmatpush1.msra.mxu0 0.0
    %633 = vmatprep.subr.mxu0 0.0
    %634 = vmatpush1.msra.mxu0 0.0
    %635 = vmatprep.subr.mxu0 0.0
    %636 = vmatpush1.msra.mxu0 0.0
    %637 = vmatprep.subr.mxu0 0.0
    %638 = vmatpush1.msra.mxu0 0.0
    %639 = vmatprep.subr.mxu0 0.0
    %640 = vmatpush1.msra.mxu0 0.0
    %641 = vmatprep.subr.mxu0 0.0
    %642 = vmatpush1.msra.mxu0 0.0
    %643 = vmatprep.subr.mxu0 0.0
    %644 = vmatpush1.msra.mxu0 0.0
    %645 = vmatprep.subr.mxu0 0.0
    %646 = vmatpush1.msra.mxu0 0.0
    %647 = vmatprep.subr.mxu0 0.0
    %648 = vmatpush1.msra.mxu0 0.0
    %649 = vmatprep.subr.mxu0 0.0
    %650 = vmatpush1.msra.mxu0 0.0
    %651 = vmatprep.subr.mxu0 0.0
    %652 = vmatpush1.msra.mxu0 0.0
    %653 = vmatprep.subr.mxu0 0.0
    %654 = vmatpush1.msra.mxu0 0.0
    %655 = vmatprep.subr.mxu0 0.0
    %656 = vmatpush1.msra.mxu0 0.0
    %657 = vmatprep.subr.mxu0 0.0
    %658 = vmatpush1.msra.mxu0 0.0
    %659 = vmatprep.subr.mxu0 0.0
    %660 = vmatpush1.msra.mxu0 0.0
    %661 = vmatprep.subr.mxu0 0.0
    %662 = vmatpush1.msra.mxu0 0.0
    %663 = vmatprep.subr.mxu0 0.0
    %664 = vmatpush1.msra.mxu0 0.0
    %665 = vmatprep.subr.mxu0 0.0
    %666 = vmatpush1.msra.mxu0 0.0
    %667 = vmatprep.subr.mxu0 0.0
    %668 = vmatpush1.msra.mxu0 0.0
    %669 = vmatprep.subr.mxu0 0.0
    %670 = vmatpush1.msra.mxu0 0.0
    %671 = vmatprep.subr.mxu0 0.0
    %672 = vmatpush1.msra.mxu0 0.0
    %673 = vmatprep.subr.mxu0 0.0
    %674 = vmatpush1.msra.mxu0 0.0
    %675 = vmatprep.subr.mxu0 0.0
    %676 = vmatpush1.msra.mxu0 0.0
    %677 = vmatprep.subr.mxu0 0.0
    %678 = vmatpush1.msra.mxu0 0.0
    %679 = vmatprep.subr.mxu0 0.0
    %680 = vmatpush1.msra.mxu0 0.0
    %681 = vmatprep.subr.mxu0 0.0
    %682 = vmatpush1.msra.mxu0 0.0
    %683 = vmatprep.subr.mxu0 0.0
    %684 = vmatpush1.msra.mxu0 0.0
    %685 = vmatprep.subr.mxu0 0.0
    %686 = vmatpush1.msra.mxu0 0.0
    %687 = vmatprep.mubr.f32.mxu0 0.0
    %688 = vmatmul.mubr.f32.gmra.mrb[0].mxu0 %v621
    %v689 = vpop.f32.mrb[0].mxu0
    %v690 = vadd.f32 %v542, %v689
    %v691 = vpop.f32.mrb[0].mxu0
    %692 = vdwg.mxu0
    %v694 = vsel %vm77, %v534, 0
    %696 = vmatprep.subr.mxu0 0.0
    %697 = vmatpush1.msra.mxu0 %v52
    %698 = vmatprep.subr.mxu0 0.0
    %699 = vmatpush1.msra.mxu0 %v53
    %700 = vmatprep.subr.mxu0 0.0
    %701 = vmatpush1.msra.mxu0 %v54
    %702 = vmatprep.subr.mxu0 0.0
    %703 = vmatpush1.msra.mxu0 %v55
    %704 = vmatprep.subr.mxu0 0.0
    %705 = vmatpush1.msra.mxu0 0.0
    %706 = vmatprep.subr.mxu0 0.0
    %707 = vmatpush1.msra.mxu0 0.0
    %708 = vmatprep.subr.mxu0 0.0
    %709 = vmatpush1.msra.mxu0 0.0
    %710 = vmatprep.subr.mxu0 0.0
    %711 = vmatpush1.msra.mxu0 0.0
    %712 = vmatprep.subr.mxu0 0.0
    %713 = vmatpush1.msra.mxu0 0.0
    %714 = vmatprep.subr.mxu0 0.0
    %715 = vmatpush1.msra.mxu0 0.0
    %716 = vmatprep.subr.mxu0 0.0
    %717 = vmatpush1.msra.mxu0 0.0
    %718 = vmatprep.subr.mxu0 0.0
    %719 = vmatpush1.msra.mxu0 0.0
    %720 = vmatprep.subr.mxu0 0.0
    %721 = vmatpush1.msra.mxu0 0.0
    %722 = vmatprep.subr.mxu0 0.0
    %723 = vmatpush1.msra.mxu0 0.0
    %724 = vmatprep.subr.mxu0 0.0
    %725 = vmatpush1.msra.mxu0 0.0
    %726 = vmatprep.subr.mxu0 0.0
    %727 = vmatpush1.msra.mxu0 0.0
    %728 = vmatprep.subr.mxu0 0.0
    %729 = vmatpush1.msra.mxu0 0.0
    %730 = vmatprep.subr.mxu0 0.0
    %731 = vmatpush1.msra.mxu0 0.0
    %732 = vmatprep.subr.mxu0 0.0
    %733 = vmatpush1.msra.mxu0 0.0
    %734 = vmatprep.subr.mxu0 0.0
    %735 = vmatpush1.msra.mxu0 0.0
    %736 = vmatprep.subr.mxu0 0.0
    %737 = vmatpush1.msra.mxu0 0.0
    %738 = vmatprep.subr.mxu0 0.0
    %739 = vmatpush1.msra.mxu0 0.0
    %740 = vmatprep.subr.mxu0 0.0
    %741 = vmatpush1.msra.mxu0 0.0
    %742 = vmatprep.subr.mxu0 0.0
    %743 = vmatpush1.msra.mxu0 0.0
    %744 = vmatprep.subr.mxu0 0.0
    %745 = vmatpush1.msra.mxu0 0.0
    %746 = vmatprep.subr.mxu0 0.0
    %747 = vmatpush1.msra.mxu0 0.0
    %748 = vmatprep.subr.mxu0 0.0
    %749 = vmatpush1.msra.mxu0 0.0
    %750 = vmatprep.subr.mxu0 0.0
    %751 = vmatpush1.msra.mxu0 0.0
    %752 = vmatprep.subr.mxu0 0.0
    %753 = vmatpush1.msra.mxu0 0.0
    %754 = vmatprep.subr.mxu0 0.0
    %755 = vmatpush1.msra.mxu0 0.0
    %756 = vmatprep.subr.mxu0 0.0
    %757 = vmatpush1.msra.mxu0 0.0
    %758 = vmatprep.subr.mxu0 0.0
    %759 = vmatpush1.msra.mxu0 0.0
    %760 = vmatprep.mubr.f32.mxu0 0.0
    %761 = vmatmul.mubr.f32.gmra.mrb[0].mxu0 %v694
    %v762 = vpop.f32.mrb[0].mxu0
    %v763 = vadd.f32 %v546, %v762
    %v764 = vpop.f32.mrb[0].mxu0
    %765 = vdwg.mxu0
    %v766 = vld [vmem:[%s3] sm:$0xff]
    %v767 = vld [vmem:[%s3 + $0x8] sm:$0xff]
    %v768 = vld [vmem:[%s3 + $0x10] sm:$0xff]
    %v769 = vld [vmem:[%s3 + $0x18] sm:$0xff]
    %v770 = vld [vmem:[%s3 + $0x20] sm:$0xff]
    %v771 = vld [vmem:[%s3 + $0x28] sm:$0xff]
    %v772 = vld [vmem:[%s3 + $0x30] sm:$0xff]
    %v773 = vld [vmem:[%s3 + $0x38] sm:$0xff]
    %v774 = vld [vmem:[%s3 + $0x40] sm:$0xff]
    %v775 = vld [vmem:[%s3 + $0x48] sm:$0xff]
    %v776 = vld [vmem:[%s3 + $0x50] sm:$0xff]
    %v777 = vld [vmem:[%s3 + $0x58] sm:$0xff]
    %v778 = vld [vmem:[%s3 + $0x60] sm:$0xff]
    %v779 = vld [vmem:[%s3 + $0x68] sm:$0xff]
    %v780 = vld [vmem:[%s3 + $0x70] sm:$0xff]
    %v781 = vld [vmem:[%s3 + $0x78] sm:$0xff]
    %v782 = vld [vmem:[%s3 + $0x80] sm:$0x7f]
    %v783 = vld [vmem:[%s4] sm:$0x1]
    %v784 = vld [vmem:[%s4 + $0x1] sm:$0x1]
    %v785 = vld [vmem:[%s4 + $0x2] sm:$0x1]
    %v786 = vld [vmem:[%s4 + $0x3] sm:$0x1]
    %v787 = vld [vmem:[%s4 + $0x4] sm:$0x1]
    %v788 = vld [vmem:[%s4 + $0x5] sm:$0x1]
    %v789 = vlaneseq
    %v790 = vshrl.u32 %v789, 7
    %v791 = vsub.s32 0, %v790
    %v792 = vrot.slane %v783, %v791
    %793 = vmatprep.subr.mxu0 0.0
    %794 = vmatpush1.msra.mxu0 %v766
    %795 = vmatprep.subr.mxu0 0.0
    %796 = vmatpush1.msra.mxu0 %v767
    %797 = vmatprep.subr.mxu0 0.0
    %798 = vmatpush1.msra.mxu0 %v768
    %799 = vmatprep.subr.mxu0 0.0
    %800 = vmatpush1.msra.mxu0 %v769
    %801 = vmatprep.subr.mxu0 0.0
    %802 = vmatpush1.msra.mxu0 0.0
    %803 = vmatprep.subr.mxu0 0.0
    %804 = vmatpush1.msra.mxu0 0.0
    %805 = vmatprep.subr.mxu0 0.0
    %806 = vmatpush1.msra.mxu0 0.0
    %807 = vmatprep.subr.mxu0 0.0
    %808 = vmatpush1.msra.mxu0 0.0
    %809 = vmatprep.subr.mxu0 0.0
    %810 = vmatpush1.msra.mxu0 0.0
    %811 = vmatprep.subr.mxu0 0.0
    %812 = vmatpush1.msra.mxu0 0.0
    %813 = vmatprep.subr.mxu0 0.0
    %814 = vmatpush1.msra.mxu0 0.0
    %815 = vmatprep.subr.mxu0 0.0
    %816 = vmatpush1.msra.mxu0 0.0
    %817 = vmatprep.subr.mxu0 0.0
    %818 = vmatpush1.msra.mxu0 0.0
    %819 = vmatprep.subr.mxu0 0.0
    %820 = vmatpush1.msra.mxu0 0.0
    %821 = vmatprep.subr.mxu0 0.0
    %822 = vmatpush1.msra.mxu0 0.0
    %823 = vmatprep.subr.mxu0 0.0
    %824 = vmatpush1.msra.mxu0 0.0
    %825 = vmatprep.subr.mxu0 0.0
    %826 = vmatpush1.msra.mxu0 0.0
    %827 = vmatprep.subr.mxu0 0.0
    %828 = vmatpush1.msra.mxu0 0.0
    %829 = vmatprep.subr.mxu0 0.0
    %830 = vmatpush1.msra.mxu0 0.0
    %831 = vmatprep.subr.mxu0 0.0
    %832 = vmatpush1.msra.mxu0 0.0
    %833 = vmatprep.subr.mxu0 0.0
    %834 = vmatpush1.msra.mxu0 0.0
    %835 = vmatprep.subr.mxu0 0.0
    %836 = vmatpush1.msra.mxu0 0.0
    %837 = vmatprep.subr.mxu0 0.0
    %838 = vmatpush1.msra.mxu0 0.0
    %839 = vmatprep.subr.mxu0 0.0
    %840 = vmatpush1.msra.mxu0 0.0
    %841 = vmatprep.subr.mxu0 0.0
    %842 = vmatpush1.msra.mxu0 0.0
    %843 = vmatprep.subr.mxu0 0.0
    %844 = vmatpush1.msra.mxu0 0.0
    %845 = vmatprep.subr.mxu0 0.0
    %846 = vmatpush1.msra.mxu0 0.0
    %847 = vmatprep.subr.mxu0 0.0
    %848 = vmatpush1.msra.mxu0 0.0
    %849 = vmatprep.subr.mxu0 0.0
    %850 = vmatpush1.msra.mxu0 0.0
    %851 = vmatprep.subr.mxu0 0.0
    %852 = vmatpush1.msra.mxu0 0.0
    %853 = vmatprep.subr.mxu0 0.0
    %854 = vmatpush1.msra.mxu0 0.0
    %855 = vmatprep.subr.mxu0 0.0
    %856 = vmatpush1.msra.mxu0 0.0
    %857 = vmatprep.mubr.f32.mxu0 0.0
    %858 = vmatmul.mubr.f32.gmra.mrb[0].mxu0 %v79
    %v859 = vpop.f32.mrb[0].mxu0
    %v860 = vadd.f32 %v792, %v859
    %v861 = vpop.f32.mrb[0].mxu0
    %862 = vmatprep.mubr.f32.mxu0 0.0
    %863 = vmatmul.mubr.f32.gmra.mrb[0].mxu0 %v152
    %v864 = vpop.f32.mrb[0].mxu0
    %v865 = vadd.f32 %v792, %v864
    %v866 = vpop.f32.mrb[0].mxu0
    %867 = vmatprep.mubr.f32.mxu0 0.0
    %868 = vmatmul.mubr.f32.gmra.mrb[0].mxu0 %v225
    %v869 = vpop.f32.mrb[0].mxu0
    %v870 = vadd.f32 %v792, %v869
    %v871 = vpop.f32.mrb[0].mxu0
    %872 = vdwg.mxu0
    %v873 = vtanh.pop %v860
    %v874 = vtanh.pop %v865
    %v875 = vtanh.pop %v870
    %v876 = vlaneseq
    %v877 = vshrl.u32 %v876, 7
    %v878 = vsub.s32 0, %v877
    %v879 = vrot.slane %v784, %v878
    %v881 = vsel %vm77, %v873, 0
    %v884 = vsel %vm77, %v874, 0
    %v887 = vsel %vm77, %v875, 0
    %889 = vmatprep.subr.mxu0 0.0
    %890 = vmatpush1.msra.mxu0 %v770
    %891 = vmatprep.subr.mxu0 0.0
    %892 = vmatpush1.msra.mxu0 %v771
    %893 = vmatprep.subr.mxu0 0.0
    %894 = vmatpush1.msra.mxu0 %v772
    %895 = vmatprep.subr.mxu0 0.0
    %896 = vmatpush1.msra.mxu0 %v773
    %897 = vmatprep.subr.mxu0 0.0
    %898 = vmatpush1.msra.mxu0 0.0
    %899 = vmatprep.subr.mxu0 0.0
    %900 = vmatpush1.msra.mxu0 0.0
    %901 = vmatprep.subr.mxu0 0.0
    %902 = vmatpush1.msra.mxu0 0.0
    %903 = vmatprep.subr.mxu0 0.0
    %904 = vmatpush1.msra.mxu0 0.0
    %905 = vmatprep.subr.mxu0 0.0
    %906 = vmatpush1.msra.mxu0 0.0
    %907 = vmatprep.subr.mxu0 0.0
    %908 = vmatpush1.msra.mxu0 0.0
    %909 = vmatprep.subr.mxu0 0.0
    %910 = vmatpush1.msra.mxu0 0.0
    %911 = vmatprep.subr.mxu0 0.0
    %912 = vmatpush1.msra.mxu0 0.0
    %913 = vmatprep.subr.mxu0 0.0
    %914 = vmatpush1.msra.mxu0 0.0
    %915 = vmatprep.subr.mxu0 0.0
    %916 = vmatpush1.msra.mxu0 0.0
    %917 = vmatprep.subr.mxu0 0.0
    %918 = vmatpush1.msra.mxu0 0.0
    %919 = vmatprep.subr.mxu0 0.0
    %920 = vmatpush1.msra.mxu0 0.0
    %921 = vmatprep.subr.mxu0 0.0
    %922 = vmatpush1.msra.mxu0 0.0
    %923 = vmatprep.subr.mxu0 0.0
    %924 = vmatpush1.msra.mxu0 0.0
    %925 = vmatprep.subr.mxu0 0.0
    %926 = vmatpush1.msra.mxu0 0.0
    %927 = vmatprep.subr.mxu0 0.0
    %928 = vmatpush1.msra.mxu0 0.0
    %929 = vmatprep.subr.mxu0 0.0
    %930 = vmatpush1.msra.mxu0 0.0
    %931 = vmatprep.subr.mxu0 0.0
    %932 = vmatpush1.msra.mxu0 0.0
    %933 = vmatprep.subr.mxu0 0.0
    %934 = vmatpush1.msra.mxu0 0.0
    %935 = vmatprep.subr.mxu0 0.0
    %936 = vmatpush1.msra.mxu0 0.0
    %937 = vmatprep.subr.mxu0 0.0
    %938 = vmatpush1.msra.mxu0 0.0
    %939 = vmatprep.subr.mxu0 0.0
    %940 = vmatpush1.msra.mxu0 0.0
    %941 = vmatprep.subr.mxu0 0.0
    %942 = vmatpush1.msra.mxu0 0.0
    %943 = vmatprep.subr.mxu0 0.0
    %944 = vmatpush1.msra.mxu0 0.0
    %945 = vmatprep.subr.mxu0 0.0
    %946 = vmatpush1.msra.mxu0 0.0
    %947 = vmatprep.subr.mxu0 0.0
    %948 = vmatpush1.msra.mxu0 0.0
    %949 = vmatprep.subr.mxu0 0.0
    %950 = vmatpush1.msra.mxu0 0.0
    %951 = vmatprep.subr.mxu0 0.0
    %952 = vmatpush1.msra.mxu0 0.0
    %953 = vmatprep.mubr.f32.mxu0 0.0
    %954 = vmatmul.mubr.f32.gmra.mrb[0].mxu0 %v881
    %v955 = vpop.f32.mrb[0].mxu0
    %v956 = vadd.f32 %v879, %v955
    %v957 = vpop.f32.mrb[0].mxu0
    %958 = vmatprep.mubr.f32.mxu0 0.0
    %959 = vmatmul.mubr.f32.gmra.mrb[0].mxu0 %v884
    %v960 = vpop.f32.mrb[0].mxu0
    %v961 = vadd.f32 %v879, %v960
    %v962 = vpop.f32.mrb[0].mxu0
    %963 = vmatprep.mubr.f32.mxu0 0.0
    %964 = vmatmul.mubr.f32.gmra.mrb[0].mxu0 %v887
    %v965 = vpop.f32.mrb[0].mxu0
    %v966 = vadd.f32 %v879, %v965
    %v967 = vpop.f32.mrb[0].mxu0
    %968 = vdwg.mxu0
    %v969 = vmax.f32 %v956, %v961
    %v970 = vmax.f32 %v969, %v966
    %v971 = vsub.f32 %v956, %v970
    %v972 = vmul.f32 %v971, 1.442695
    %v973 = vpow.pop %v972
    %v974 = vsub.f32 %v961, %v970
    %v975 = vmul.f32 %v974, 1.442695
    %v976 = vpow.pop %v975
    %v977 = vsub.f32 %v966, %v970
    %v978 = vmul.f32 %v977, 1.442695
    %v979 = vpow.pop %v978
    %v980 = vadd.f32 %v973, %v976
    %v981 = vadd.f32 %v980, %v979
    %v982 = vrcp.pop %v981
    %v983 = vmul.f32 1.0, %v982
    %v984 = vmul.f32 %v973, %v983
    %v985 = vmul.f32 %v976, %v983
    %v986 = vmul.f32 %v979, %v983
    %vm987 = vcmask 56320
    %988 = vst.msk [vmem:[#allocation2] sm:$0xff] %vm987, %v984
    %989 = vst.msk [vmem:[#allocation2 + $0x8] sm:$0xff] %vm987, %v985
    %990 = vst.msk [vmem:[#allocation2 + $0x10] sm:$0xff] %vm987, %v986
    %v991 = vlaneseq
    %v992 = vshrl.u32 %v991, 7
    %v993 = vsub.s32 0, %v992
    %v994 = vrot.slane %v785, %v993
    %v995 = vmul.f32 %v984, %v994
    %v996 = vsel %vm987, %v995, 0.0
    %997 = vadd.xlane.f32.xlu0 %v996
    %v998 = vpop.xlane.xlu0 %997
    %v999 = vmul.f32 %v985, %v994
    %v1000 = vsel %vm987, %v999, 0.0
    %1001 = vadd.xlane.f32.xlu0 %v1000
    %v1002 = vpop.xlane.xlu0 %1001
    %v1003 = vmul.f32 %v986, %v994
    %v1004 = vsel %vm987, %v1003, 0.0
    %1005 = vadd.xlane.f32.xlu0 %v1004
    %v1006 = vpop.xlane.xlu0 %1005
    %v1007 = vmul.f32 %v998, %v23
    %v1008 = vmul.f32 %v1002, %v24
    %v1009 = vadd.f32 %v1007, %v1008
    %v1010 = vmul.f32 %v1006, %v25
    %v1011 = vadd.f32 %v1009, %v1010
    %v1012 = vlaneseq
    %v1013 = vshrl.u32 %v1012, 7
    %v1014 = vsub.s32 0, %v1013
    %v1015 = vrot.slane %v786, %v1014
    %v1017 = vsel %vm77, %v1011, 0
    %1019 = vmatprep.subr.mxu0 0.0
    %1020 = vmatpush1.msra.mxu0 %v774
    %1021 = vmatprep.subr.mxu0 0.0
    %1022 = vmatpush1.msra.mxu0 %v775
    %1023 = vmatprep.subr.mxu0 0.0
    %1024 = vmatpush1.msra.mxu0 %v776
    %1025 = vmatprep.subr.mxu0 0.0
    %1026 = vmatpush1.msra.mxu0 %v777
    %1027 = vmatprep.subr.mxu0 0.0
    %1028 = vmatpush1.msra.mxu0 0.0
    %1029 = vmatprep.subr.mxu0 0.0
    %1030 = vmatpush1.msra.mxu0 0.0
    %1031 = vmatprep.subr.mxu0 0.0
    %1032 = vmatpush1.msra.mxu0 0.0
    %1033 = vmatprep.subr.mxu0 0.0
    %1034 = vmatpush1.msra.mxu0 0.0
    %1035 = vmatprep.subr.mxu0 0.0
    %1036 = vmatpush1.msra.mxu0 0.0
    %1037 = vmatprep.subr.mxu0 0.0
    %1038 = vmatpush1.msra.mxu0 0.0
    %1039 = vmatprep.subr.mxu0 0.0
    %1040 = vmatpush1.msra.mxu0 0.0
    %1041 = vmatprep.subr.mxu0 0.0
    %1042 = vmatpush1.msra.mxu0 0.0
    %1043 = vmatprep.subr.mxu0 0.0
    %1044 = vmatpush1.msra.mxu0 0.0
    %1045 = vmatprep.subr.mxu0 0.0
    %1046 = vmatpush1.msra.mxu0 0.0
    %1047 = vmatprep.subr.mxu0 0.0
    %1048 = vmatpush1.msra.mxu0 0.0
    %1049 = vmatprep.subr.mxu0 0.0
    %1050 = vmatpush1.msra.mxu0 0.0
    %1051 = vmatprep.subr.mxu0 0.0
    %1052 = vmatpush1.msra.mxu0 0.0
    %1053 = vmatprep.subr.mxu0 0.0
    %1054 = vmatpush1.msra.mxu0 0.0
    %1055 = vmatprep.subr.mxu0 0.0
    %1056 = vmatpush1.msra.mxu0 0.0
    %1057 = vmatprep.subr.mxu0 0.0
    %1058 = vmatpush1.msra.mxu0 0.0
    %1059 = vmatprep.subr.mxu0 0.0
    %1060 = vmatpush1.msra.mxu0 0.0
    %1061 = vmatprep.subr.mxu0 0.0
    %1062 = vmatpush1.msra.mxu0 0.0
    %1063 = vmatprep.subr.mxu0 0.0
    %1064 = vmatpush1.msra.mxu0 0.0
    %1065 = vmatprep.subr.mxu0 0.0
    %1066 = vmatpush1.msra.mxu0 0.0
    %1067 = vmatprep.subr.mxu0 0.0
    %1068 = vmatpush1.msra.mxu0 0.0
    %1069 = vmatprep.subr.mxu0 0.0
    %1070 = vmatpush1.msra.mxu0 0.0
    %1071 = vmatprep.subr.mxu0 0.0
    %1072 = vmatpush1.msra.mxu0 0.0
    %1073 = vmatprep.subr.mxu0 0.0
    %1074 = vmatpush1.msra.mxu0 0.0
    %1075 = vmatprep.subr.mxu0 0.0
    %1076 = vmatpush1.msra.mxu0 0.0
    %1077 = vmatprep.subr.mxu0 0.0
    %1078 = vmatpush1.msra.mxu0 0.0
    %1079 = vmatprep.subr.mxu0 0.0
    %1080 = vmatpush1.msra.mxu0 0.0
    %1081 = vmatprep.subr.mxu0 0.0
    %1082 = vmatpush1.msra.mxu0 0.0
    %1083 = vmatprep.mubr.f32.mxu0 0.0
    %1084 = vmatmul.mubr.f32.gmra.mrb[0].mxu0 %v1017
    %v1085 = vpop.f32.mrb[0].mxu0
    %v1086 = vadd.f32 %v1015, %v1085
    %v1087 = vpop.f32.mrb[0].mxu0
    %1088 = vdwg.mxu0
    %v1089 = vmax.f32 %v1086, 0.0
    %v1090 = vlaneseq
    %v1091 = vshrl.u32 %v1090, 7
    %v1092 = vsub.s32 0, %v1091
    %v1093 = vrot.slane %v787, %v1092
    %v1095 = vsel %vm77, %v1089, 0
    %1097 = vmatprep.subr.mxu0 0.0
    %1098 = vmatpush1.msra.mxu0 %v778
    %1099 = vmatprep.subr.mxu0 0.0
    %1100 = vmatpush1.msra.mxu0 %v779
    %1101 = vmatprep.subr.mxu0 0.0
    %1102 = vmatpush1.msra.mxu0 %v780
    %1103 = vmatprep.subr.mxu0 0.0
    %1104 = vmatpush1.msra.mxu0 %v781
    %1105 = vmatprep.subr.mxu0 0.0
    %1106 = vmatpush1.msra.mxu0 0.0
    %1107 = vmatprep.subr.mxu0 0.0
    %1108 = vmatpush1.msra.mxu0 0.0
    %1109 = vmatprep.subr.mxu0 0.0
    %1110 = vmatpush1.msra.mxu0 0.0
    %1111 = vmatprep.subr.mxu0 0.0
    %1112 = vmatpush1.msra.mxu0 0.0
    %1113 = vmatprep.subr.mxu0 0.0
    %1114 = vmatpush1.msra.mxu0 0.0
    %1115 = vmatprep.subr.mxu0 0.0
    %1116 = vmatpush1.msra.mxu0 0.0
    %1117 = vmatprep.subr.mxu0 0.0
    %1118 = vmatpush1.msra.mxu0 0.0
    %1119 = vmatprep.subr.mxu0 0.0
    %1120 = vmatpush1.msra.mxu0 0.0
    %1121 = vmatprep.subr.mxu0 0.0
    %1122 = vmatpush1.msra.mxu0 0.0
    %1123 = vmatprep.subr.mxu0 0.0
    %1124 = vmatpush1.msra.mxu0 0.0
    %1125 = vmatprep.subr.mxu0 0.0
    %1126 = vmatpush1.msra.mxu0 0.0
    %1127 = vmatprep.subr.mxu0 0.0
    %1128 = vmatpush1.msra.mxu0 0.0
    %1129 = vmatprep.subr.mxu0 0.0
    %1130 = vmatpush1.msra.mxu0 0.0
    %1131 = vmatprep.subr.mxu0 0.0
    %1132 = vmatpush1.msra.mxu0 0.0
    %1133 = vmatprep.subr.mxu0 0.0
    %1134 = vmatpush1.msra.mxu0 0.0
    %1135 = vmatprep.subr.mxu0 0.0
    %1136 = vmatpush1.msra.mxu0 0.0
    %1137 = vmatprep.subr.mxu0 0.0
    %1138 = vmatpush1.msra.mxu0 0.0
    %1139 = vmatprep.subr.mxu0 0.0
    %1140 = vmatpush1.msra.mxu0 0.0
    %1141 = vmatprep.subr.mxu0 0.0
    %1142 = vmatpush1.msra.mxu0 0.0
    %1143 = vmatprep.subr.mxu0 0.0
    %1144 = vmatpush1.msra.mxu0 0.0
    %1145 = vmatprep.subr.mxu0 0.0
    %1146 = vmatpush1.msra.mxu0 0.0
    %1147 = vmatprep.subr.mxu0 0.0
    %1148 = vmatpush1.msra.mxu0 0.0
    %1149 = vmatprep.subr.mxu0 0.0
    %1150 = vmatpush1.msra.mxu0 0.0
    %1151 = vmatprep.subr.mxu0 0.0
    %1152 = vmatpush1.msra.mxu0 0.0
    %1153 = vmatprep.subr.mxu0 0.0
    %1154 = vmatpush1.msra.mxu0 0.0
    %1155 = vmatprep.subr.mxu0 0.0
    %1156 = vmatpush1.msra.mxu0 0.0
    %1157 = vmatprep.subr.mxu0 0.0
    %1158 = vmatpush1.msra.mxu0 0.0
    %1159 = vmatprep.subr.mxu0 0.0
    %1160 = vmatpush1.msra.mxu0 0.0
    %1161 = vmatprep.mubr.f32.mxu0 0.0
    %1162 = vmatmul.mubr.f32.gmra.mrb[0].mxu0 %v1095
    %v1163 = vpop.f32.mrb[0].mxu0
    %v1164 = vadd.f32 %v1093, %v1163
    %v1165 = vpop.f32.mrb[0].mxu0
    %1166 = vdwg.mxu0
    %v1167 = vlaneseq
    %v1168 = vshrl.u32 %v1167, 7
    %v1169 = vsub.s32 0, %v1168
    %v1170 = vrot.slane %v788, %v1169
    %v1172 = vsel %vm987, %v1164, 0
    %vm1174 = vcmask 1046528
    %v1176 = vsel %vm1174, %v782, 0
    %1178 = vmatprep.subr.mxu0 0.0
    %1179 = vmatpush1.msra.mxu0 %v1176
    %1180 = vmatprep.subr.mxu0 0.0
    %1181 = vmatpush1.msra.mxu0 0.0
    %1182 = vmatprep.subr.mxu0 0.0
    %1183 = vmatpush1.msra.mxu0 0.0
    %1184 = vmatprep.subr.mxu0 0.0
    %1185 = vmatpush1.msra.mxu0 0.0
    %1186 = vmatprep.subr.mxu0 0.0
    %1187 = vmatpush1.msra.mxu0 0.0
    %1188 = vmatprep.subr.mxu0 0.0
    %1189 = vmatpush1.msra.mxu0 0.0
    %1190 = vmatprep.subr.mxu0 0.0
    %1191 = vmatpush1.msra.mxu0 0.0
    %1192 = vmatprep.subr.mxu0 0.0
    %1193 = vmatpush1.msra.mxu0 0.0
    %1194 = vmatprep.subr.mxu0 0.0
    %1195 = vmatpush1.msra.mxu0 0.0
    %1196 = vmatprep.subr.mxu0 0.0
    %1197 = vmatpush1.msra.mxu0 0.0
    %1198 = vmatprep.subr.mxu0 0.0
    %1199 = vmatpush1.msra.mxu0 0.0
    %1200 = vmatprep.subr.mxu0 0.0
    %1201 = vmatpush1.msra.mxu0 0.0
    %1202 = vmatprep.subr.mxu0 0.0
    %1203 = vmatpush1.msra.mxu0 0.0
    %1204 = vmatprep.subr.mxu0 0.0
    %1205 = vmatpush1.msra.mxu0 0.0
    %1206 = vmatprep.subr.mxu0 0.0
    %1207 = vmatpush1.msra.mxu0 0.0
    %1208 = vmatprep.subr.mxu0 0.0
    %1209 = vmatpush1.msra.mxu0 0.0
    %1210 = vmatprep.subr.mxu0 0.0
    %1211 = vmatpush1.msra.mxu0 0.0
    %1212 = vmatprep.subr.mxu0 0.0
    %1213 = vmatpush1.msra.mxu0 0.0
    %1214 = vmatprep.subr.mxu0 0.0
    %1215 = vmatpush1.msra.mxu0 0.0
    %1216 = vmatprep.subr.mxu0 0.0
    %1217 = vmatpush1.msra.mxu0 0.0
    %1218 = vmatprep.subr.mxu0 0.0
    %1219 = vmatpush1.msra.mxu0 0.0
    %1220 = vmatprep.subr.mxu0 0.0
    %1221 = vmatpush1.msra.mxu0 0.0
    %1222 = vmatprep.subr.mxu0 0.0
    %1223 = vmatpush1.msra.mxu0 0.0
    %1224 = vmatprep.subr.mxu0 0.0
    %1225 = vmatpush1.msra.mxu0 0.0
    %1226 = vmatprep.subr.mxu0 0.0
    %1227 = vmatpush1.msra.mxu0 0.0
    %1228 = vmatprep.subr.mxu0 0.0
    %1229 = vmatpush1.msra.mxu0 0.0
    %1230 = vmatprep.subr.mxu0 0.0
    %1231 = vmatpush1.msra.mxu0 0.0
    %1232 = vmatprep.subr.mxu0 0.0
    %1233 = vmatpush1.msra.mxu0 0.0
    %1234 = vmatprep.subr.mxu0 0.0
    %1235 = vmatpush1.msra.mxu0 0.0
    %1236 = vmatprep.subr.mxu0 0.0
    %1237 = vmatpush1.msra.mxu0 0.0
    %1238 = vmatprep.subr.mxu0 0.0
    %1239 = vmatpush1.msra.mxu0 0.0
    %1240 = vmatprep.subr.mxu0 0.0
    %1241 = vmatpush1.msra.mxu0 0.0
    %1242 = vmatprep.mubr.f32.mxu0 0.0
    %1243 = vmatmul.mubr.f32.gmra.mrb[0].mxu0 %v1172
    %v1244 = vpop.f32.mrb[0].mxu0
    %v1245 = vadd.f32 %v1170, %v1244
    %v1246 = vpop.f32.mrb[0].mxu0
    %1247 = vdwg.mxu0
    %1248 = vst.msk [vmem:[%s6] sm:$0xff] %vm987, %v617
    %1250 = vrot.lane.b32.xlu0 %v690, 7
    %v1251 = vpop.permute.xlu0 %1250
    %vm1253 = vcmask 113720
    %1254 = vst.msk [vmem:[%s6] sm:$0xff] %vm1253, %v1251
    %1256 = vrot.lane.b32.xlu0 %v763, 14
    %v1257 = vpop.permute.xlu0 %1256
    %vm1259 = vcmask 171120
    %1260 = vst.msk [vmem:[%s6] sm:$0xff] %vm1259, %v1257
    %1262 = vrot.lane.b32.xlu0 %v1245, 21
    %v1263 = vpop.permute.xlu0 %1262
    %vm1265 = vcmask 228520
    %1266 = vst.msk [vmem:[%s6] sm:$0xff] %vm1265, %v1263
    // Predicated region
    $region22: #{emo_class_attention_forward.1} parent=1 // pred_check
      _
    $region23: #{emo_class_attention_forward.1} parent=1 // pred_check_branch
      %1268 = sbr.rel (0) target = $region25
    $region24: #{emo_class_attention_forward.1} parent=1 // pred_region
      %s1270 = ssub.s32 384, 384
      %1271 = vsyncadd [#allocation3], %s1270
      %s1272 = sshll.u32 [#allocation2], 4
      %s1273 = int_to_ptr.vmem [resolvable:$true] %s1272
      %1278 = dma.vmem_to_hbm [thread:$0]  %s1273, 384, %s5, [#allocation3], 128, 128, 8
    $region25: #{emo_class_attention_forward.1} parent=1 // pred_fallthru
      _
    // Predicated region
    $region26: #{emo_class_attention_forward.1} parent=1 // pred_check
      _
    $region27: #{emo_class_attention_forward.1} parent=1 // pred_check_branch
      %1280 = sbr.rel (0) target = $region29
    $region28: #{emo_class_attention_forward.1} parent=1 // pred_region
      _
    $region29: #{emo_class_attention_forward.1} parent=1 // pred_fallthru
      _
    // Predicated region
    $region30: #{emo_class_attention_forward.1} parent=1 // pred_check
      _
    $region31: #{emo_class_attention_forward.1} parent=1 // pred_check_branch
      %1282 = sbr.rel (0) target = $region33
    $region32: #{emo_class_attention_forward.1} parent=1 // pred_region
      %1283 = dma.done [#allocation3], 384
    $region33: #{emo_class_attention_forward.1} parent=1 // pred_fallthru
      _
    // Predicated region
    $region34: #{emo_class_attention_forward.1} parent=1 // pred_check
      _
    $region35: #{emo_class_attention_forward.1} parent=1 // pred_check_branch
      %1285 = sbr.rel (0) target = $region37
    $region36: #{emo_class_attention_forward.1} parent=1 // pred_region
      _
    $region37: #{emo_class_attention_forward.1} parent=1 // pred_fallthru
      _
    %1286 = vsyncpa [#allocation3], 1

</llo_original>
